<compile_context>
chip_gen: v7x
topology: tpu7x:2x2x1
jax: 0.10.0
libtpu: 0.0.40
codegen_flags: <defaults>
</compile_context>

<pallas_src>
import functools

import jax
import jax.numpy as jnp
import numpy as np
from jax.experimental import pallas as pl
from jax.experimental.pallas import tpu as pltpu


# ---------------------------------------------------------------------------
# Kernels
# ---------------------------------------------------------------------------

def _conv_bn_stats_kernel(*refs, apply_norm):
    """3x3 'same' conv on one (batch, row-tile) block + partial BN statistics.

    If apply_norm=True the input tile is first normalized with the previous
    BN's (mean, rsqrt) and ReLU'd (fused BN+ReLU of the previous stage).
    """
    if apply_norm:
        mean_ref, scale_ref, xt_ref, xm_ref, xb_ref, w_ref, y_ref, st_ref = refs
    else:
        xt_ref, xm_ref, xb_ref, w_ref, y_ref, st_ref = refs
        mean_ref = scale_ref = None

    i = pl.program_id(1)              # row-tile index
    nrt = pl.num_programs(1)
    _, TH, W, C = xm_ref.shape
    Cout = y_ref.shape[3]

    # Assemble the row slab [top halo row, TH main rows, bottom halo row].
    rows = jnp.concatenate([xt_ref[0], xm_ref[0], xb_ref[0]], axis=0)   # (TH+2, W, C)

    if apply_norm:
        # Fused BN (training-mode, fresh params) + ReLU of the previous stage.
        rows = jnp.maximum((rows - mean_ref[...]) * scale_ref[...], 0.0)

    # Zero the out-of-image halo rows (top row of the first tile, bottom row of
    # the last tile).  Their clamped index_maps loaded duplicate in-image data,
    # which must become the conv's zero padding.
    ridx = jax.lax.broadcasted_iota(jnp.int32, (TH + 2, 1, 1), 0)
    valid = jnp.logical_and(jnp.logical_or(ridx > 0, i > 0),
                            jnp.logical_or(ridx < TH + 1, i < nrt - 1))
    rows = jnp.where(valid, rows, 0.0)

    # Zero-pad the width by one column on each side (image W boundary).
    zcol = jnp.zeros((TH + 2, 1, C), jnp.float32)
    xpad = jnp.concatenate([zcol, rows, zcol], axis=1)                  # (TH+2, W+2, C)

    # im2col slab: 9 shifted windows stacked on the channel axis, then a single
    # MXU dot with K = 9*C (instead of 9 tiny K=C matmuls).
    cols = [xpad[ky:ky + TH, kx:kx + W, :] for ky in range(3) for kx in range(3)]
    im2col = jnp.concatenate(cols, axis=-1).reshape(TH * W, 9 * C)
    y = jnp.dot(im2col, w_ref[...], preferred_element_type=jnp.float32)  # (TH*W, Cout)

    y_ref[...] = y.reshape(1, TH, W, Cout)

    # Per-tile partial BatchNorm statistics (sum, sum of squares) per channel.
    s = jnp.sum(y, axis=0, keepdims=True)                               # (1, Cout)
    ss = jnp.sum(y * y, axis=0, keepdims=True)                          # (1, Cout)
    st_ref[...] = jnp.concatenate([s, ss], axis=0).reshape(1, 1, 2, Cout)


def _bn_relu_kernel(mean_ref, scale_ref, y_ref, o_ref):
    """Final BatchNorm (precomputed mean / rsqrt) + ReLU, one tile per step."""
    o_ref[...] = jnp.maximum((y_ref[...] - mean_ref[...]) * scale_ref[...], 0.0)


# ---------------------------------------------------------------------------
# pallas_call wrappers
# ---------------------------------------------------------------------------

_VMEM_LIMIT = 48 * 1024 * 1024   # safe on v5e/v6e (128 MiB) and v7x (64 MiB)


def _pick_row_tile(H, W, c_in, c_out, budget_bytes=6 * 1024 * 1024):
    """Largest divisor of H whose per-tile f32 temporaries fit the budget."""
    per_row = 4 * W * (9 * c_in + 3 * c_in + 2 * c_out)   # im2col dominates
    best = 1
    for d in range(1, H + 1):
        if H % d == 0 and d * per_row <= budget_bytes:
            best = d
    return best


def _conv_pass(x_nhwc, w_mat, norm_params, row_tile):
    """One conv stage: (optional fused BN+ReLU of input) -> 3x3 conv -> partial stats."""
    N, H, W, Cin = x_nhwc.shape
    Cout = w_mat.shape[1]
    TH = row_tile
    assert H % TH == 0
    nrt = H // TH
    apply_norm = norm_params is not None

    def xm_map(n, i):
        return (n, i, 0, 0)                                   # TH-row main tile

    def xt_map(n, i):                                         # 1-row top halo (clamped)
        return (n, jnp.maximum(i * TH - 1, 0), 0, 0)

    def xb_map(n, i):                                         # 1-row bottom halo (clamped)
        return (n, jnp.minimum(i * TH + TH, H - 1), 0, 0)

    in_specs = []
    args = []
    if apply_norm:
        mean, scale = norm_params
        in_specs += [pl.BlockSpec((1, Cin), lambda n, i: (0, 0)),
                     pl.BlockSpec((1, Cin), lambda n, i: (0, 0))]
        args += [mean, scale]
    in_specs += [
        pl.BlockSpec((1, 1, W, Cin), xt_map),
        pl.BlockSpec((1, TH, W, Cin), xm_map),
        pl.BlockSpec((1, 1, W, Cin), xb_map),
        pl.BlockSpec((9 * Cin, Cout), lambda n, i: (0, 0)),
    ]
    args += [x_nhwc, x_nhwc, x_nhwc, w_mat]

    out_shape = (jax.ShapeDtypeStruct((N, H, W, Cout), jnp.float32),
                 jax.ShapeDtypeStruct((N, nrt, 2, Cout), jnp.float32))
    out_specs = (pl.BlockSpec((1, TH, W, Cout), lambda n, i: (n, i, 0, 0)),
                 pl.BlockSpec((1, 1, 2, Cout), lambda n, i: (n, i, 0, 0)))

    y, st = pl.pallas_call(
        functools.partial(_conv_bn_stats_kernel, apply_norm=apply_norm),
        grid=(N, nrt),
        in_specs=in_specs,
        out_specs=out_specs,
        out_shape=out_shape,
        compiler_params=pltpu.CompilerParams(
            dimension_semantics=("parallel", "parallel"),
            vmem_limit_bytes=_VMEM_LIMIT),
    )(*args)
    return y, st


def _bn_relu_pass(y, mean, scale, row_tile):
    N, H, W, C = y.shape
    TH = row_tile
    assert H % TH == 0
    nrt = H // TH
    return pl.pallas_call(
        _bn_relu_kernel,
        grid=(N, nrt),
        in_specs=[pl.BlockSpec((1, C), lambda n, i: (0, 0)),
                  pl.BlockSpec((1, C), lambda n, i: (0, 0)),
                  pl.BlockSpec((1, TH, W, C), lambda n, i: (n, i, 0, 0))],
        out_specs=pl.BlockSpec((1, TH, W, C), lambda n, i: (n, i, 0, 0)),
        out_shape=jax.ShapeDtypeStruct((N, H, W, C), jnp.float32),
        compiler_params=pltpu.CompilerParams(
            dimension_semantics=("parallel", "parallel"),
            vmem_limit_bytes=_VMEM_LIMIT),
    )(mean, scale, y)


def _finalize_stats(st, count, eps=1e-5):
    """Reduce per-tile (sum, sumsq) partials -> (mean, rsqrt(var+eps)), each (1, C)."""
    sums = jnp.sum(st, axis=(0, 1))                # (2, C)
    mean = sums[0] / count
    var = jnp.maximum(sums[1] / count - mean * mean, 0.0)   # biased variance
    scale = jax.lax.rsqrt(var + eps)
    return mean.reshape(1, -1), scale.reshape(1, -1)


def conv_block_forward(x_nchw, w1, b1, w2, b2, row_tile=None):
    """x_nchw: (N, Cin, H, W); w*: (Cout, Cin/Cout, 3, 3) OIHW; b*: (Cout,).
    Returns (N, Cout, H, W), matching the PyTorch module (norm_name='batch').

    Conv biases b1/b2 are accepted for API parity but are mathematically
    cancelled by the fresh training-mode BatchNorm (mean subtraction), so they
    are not used inside the kernels.
    """
    del b1, b2
    N, Cin, H, W = x_nchw.shape
    Cout = w1.shape[0]

    x = jnp.transpose(x_nchw, (0, 2, 3, 1)).astype(jnp.float32)          # NHWC
    # Weights: OIHW -> HWIO -> (9*Cin, Cout); row order (ky, kx, ci) matches
    # the in-kernel im2col concatenation order.
    w1m = jnp.transpose(w1, (2, 3, 1, 0)).reshape(9 * Cin, Cout).astype(jnp.float32)
    w2m = jnp.transpose(w2, (2, 3, 1, 0)).reshape(9 * Cout, Cout).astype(jnp.float32)

    if row_tile is not None:
        assert H % row_tile == 0, "row_tile must divide H"
        th1 = th2 = row_tile
    else:
        th1 = _pick_row_tile(H, W, Cin, Cout)
        th2 = _pick_row_tile(H, W, Cout, Cout)

    count = N * H * W

    # Pass 1: conv1 + partial BN1 stats.
    y1, st1 = _conv_pass(x, w1m, None, th1)
    m1, s1 = _finalize_stats(st1, count)

    # Pass 2: fused BN1+ReLU (folded into the tile load) -> conv2 + partial BN2 stats.
    y2, st2 = _conv_pass(y1, w2m, (m1, s1), th2)
    m2, s2 = _finalize_stats(st2, count)

    # Pass 3: final BN2 + ReLU (tiled elementwise kernel).
    out_nhwc = _bn_relu_pass(y2, m2, s2, th2)

    return jnp.transpose(out_nhwc, (0, 3, 1, 2))


# ---------------------------------------------------------------------------
# Pure-JAX reference mirroring the PyTorch module (norm_name='batch')
# ---------------------------------------------------------------------------

def _reference_forward(x, w1, b1, w2, b2):
    def conv(x, w, b):
        y = jax.lax.conv_general_dilated(
            x, w, window_strides=(1, 1), padding="SAME",
            dimension_numbers=("NCHW", "OIHW", "NCHW"))
        return y + b[None, :, None, None]

    def bn_relu(y):
        mean = jnp.mean(y, axis=(0, 2, 3), keepdims=True)
        var = jnp.mean((y - mean) ** 2, axis=(0, 2, 3), keepdims=True)
        return jnp.maximum((y - mean) / jnp.sqrt(var + 1e-5), 0.0)

    y = bn_relu(conv(x, w1, b1))
    return bn_relu(conv(y, w2, b2))


if __name__ == "__main__":
    # Shapes consistent with the module: conv_block(in_c=4, out_c=8, 'batch')
    N, Cin, Cout, H, W = 2, 4, 8, 16, 16

    key = jax.random.PRNGKey(0)
    kx_, kw1, kb1, kw2, kb2 = jax.random.split(key, 5)
    x = jax.random.normal(kx_, (N, Cin, H, W), dtype=jnp.float32)
    w1 = jax.random.normal(kw1, (Cout, Cin, 3, 3), dtype=jnp.float32) * 0.1
    b1 = jax.random.normal(kb1, (Cout,), dtype=jnp.float32) * 0.1
    w2 = jax.random.normal(kw2, (Cout, Cout, 3, 3), dtype=jnp.float32) * 0.1
    b2 = jax.random.normal(kb2, (Cout,), dtype=jnp.float32) * 0.1

    ref = jax.block_until_ready(_reference_forward(x, w1, b1, w2, b2))

    # Multi-row-tile path: exercises the halo index_maps and edge masking.
    out_tiled = jax.block_until_ready(
        conv_block_forward(x, w1, b1, w2, b2, row_tile=8))
    # Auto tile pick (single row tile at this tiny size).
    out_auto = jax.block_until_ready(conv_block_forward(x, w1, b1, w2, b2))

    assert out_tiled.shape == (N, Cout, H, W)
    assert np.allclose(np.asarray(out_tiled), np.asarray(ref), atol=2e-4, rtol=2e-4)
    assert np.allclose(np.asarray(out_auto), np.asarray(ref), atol=2e-4, rtol=2e-4)

    print("KERNEL_OK")
</pallas_src>

<mosaic_0001>
module attributes {stable_mosaic.version = 11 : i64} {
  func.func @_conv_bn_stats_kernel(%arg0: i32, %arg1: i32, %arg2: memref<1x1x16x4xf32, #tpu.memory_space<vmem>>, %arg3: memref<1x8x16x4xf32, #tpu.memory_space<vmem>>, %arg4: memref<1x1x16x4xf32, #tpu.memory_space<vmem>>, %arg5: memref<36x8xf32, #tpu.memory_space<vmem>>, %arg6: memref<1x8x16x8xf32, #tpu.memory_space<vmem>>, %arg7: memref<1x1x2x8xf32, #tpu.memory_space<vmem>>) attributes {dimension_semantics = [#tpu.dimension_semantics<parallel>, #tpu.dimension_semantics<parallel>], iteration_bounds = array<i64: 2, 2>, scalar_prefetch = 0 : i64, scratch_operands = 0 : i64, tpu.core_type = #tpu.core_type<tc>, window_params = [{transform_indices = @transform_0, window_bounds = array<i64: 1, 1, 16, 4>}, {transform_indices = @transform_1, window_bounds = array<i64: 1, 8, 16, 4>}, {transform_indices = @transform_2, window_bounds = array<i64: 1, 1, 16, 4>}, {pipeline_mode = #tpu.pipeline_mode<synchronous>, transform_indices = @transform_3, window_bounds = array<i64: 36, 8>}, {transform_indices = @transform_4, window_bounds = array<i64: 1, 8, 16, 8>}, {transform_indices = @transform_5, window_bounds = array<i64: 1, 1, 2, 8>}]} {
    %c0 = arith.constant 0 : index
    %c0_0 = arith.constant 0 : index
    %c0_1 = arith.constant 0 : index
    %c0_2 = arith.constant 0 : index
    %0 = vector.load %arg2[%c0, %c0_0, %c0_1, %c0_2] : memref<1x1x16x4xf32, #tpu.memory_space<vmem>>, vector<1x1x16x4xf32>
    %1 = vector.shape_cast %0 : vector<1x1x16x4xf32> to vector<1x16x4xf32>
    %c0_3 = arith.constant 0 : index
    %c0_4 = arith.constant 0 : index
    %c0_5 = arith.constant 0 : index
    %c0_6 = arith.constant 0 : index
    %2 = vector.load %arg3[%c0_3, %c0_4, %c0_5, %c0_6] : memref<1x8x16x4xf32, #tpu.memory_space<vmem>>, vector<1x8x16x4xf32>
    %3 = vector.shape_cast %2 : vector<1x8x16x4xf32> to vector<8x16x4xf32>
    %c0_7 = arith.constant 0 : index
    %c0_8 = arith.constant 0 : index
    %c0_9 = arith.constant 0 : index
    %c0_10 = arith.constant 0 : index
    %4 = vector.load %arg4[%c0_7, %c0_8, %c0_9, %c0_10] : memref<1x1x16x4xf32, #tpu.memory_space<vmem>>, vector<1x1x16x4xf32>
    %5 = vector.shape_cast %4 : vector<1x1x16x4xf32> to vector<1x16x4xf32>
    %6 = tpu.concatenate %1, %3, %5 in 0 : vector<1x16x4xf32>, vector<8x16x4xf32>, vector<1x16x4xf32> -> vector<10x16x4xf32>
    %7 = tpu.iota {dimensions = array<i32: 0>} : vector<10x1x1xi32>
    %c0_i32 = arith.constant 0 : i32
    %8 = vector.broadcast %c0_i32 : i32 to vector<10x1x1xi32>
    %9 = arith.cmpi sgt, %7, %8 : vector<10x1x1xi32>
    %c0_i32_11 = arith.constant 0 : i32
    %10 = arith.cmpi sgt, %arg1, %c0_i32_11 : i32
    %11 = vector.broadcast %10 : i1 to vector<10x1x1xi1>
    %12 = arith.ori %9, %11 : vector<10x1x1xi1>
    %c9_i32 = arith.constant 9 : i32
    %13 = vector.broadcast %c9_i32 : i32 to vector<10x1x1xi32>
    %14 = arith.cmpi slt, %7, %13 : vector<10x1x1xi32>
    %c1_i32 = arith.constant 1 : i32
    %15 = arith.cmpi slt, %arg1, %c1_i32 : i32
    %16 = vector.broadcast %15 : i1 to vector<10x1x1xi1>
    %17 = arith.ori %14, %16 : vector<10x1x1xi1>
    %18 = arith.andi %12, %17 : vector<10x1x1xi1>
    %cst = arith.constant 0.000000e+00 : f32
    %19 = vector.shape_cast %18 : vector<10x1x1xi1> to vector<10x1x1xi1>
    %20 = vector.broadcast %19 : vector<10x1x1xi1> to vector<10x16x4xi1>
    %21 = vector.broadcast %cst : f32 to vector<10x16x4xf32>
    %22 = arith.select %20, %6, %21 : vector<10x16x4xi1>, vector<10x16x4xf32>
    %cst_12 = arith.constant 0.000000e+00 : f32
    %23 = vector.broadcast %cst_12 : f32 to vector<10x1x4xf32>
    %24 = tpu.concatenate %23, %22, %23 in 1 : vector<10x1x4xf32>, vector<10x16x4xf32>, vector<10x1x4xf32> -> vector<10x18x4xf32>
    %25 = vector.extract_strided_slice %24 {offsets = [0, 0, 0], sizes = [8, 16, 4], strides = [1, 1, 1]} : vector<10x18x4xf32> to vector<8x16x4xf32>
    %26 = vector.extract_strided_slice %24 {offsets = [0, 1, 0], sizes = [8, 16, 4], strides = [1, 1, 1]} : vector<10x18x4xf32> to vector<8x16x4xf32>
    %27 = vector.extract_strided_slice %24 {offsets = [0, 2, 0], sizes = [8, 16, 4], strides = [1, 1, 1]} : vector<10x18x4xf32> to vector<8x16x4xf32>
    %28 = vector.extract_strided_slice %24 {offsets = [1, 0, 0], sizes = [8, 16, 4], strides = [1, 1, 1]} : vector<10x18x4xf32> to vector<8x16x4xf32>
    %29 = vector.extract_strided_slice %24 {offsets = [1, 1, 0], sizes = [8, 16, 4], strides = [1, 1, 1]} : vector<10x18x4xf32> to vector<8x16x4xf32>
    %30 = vector.extract_strided_slice %24 {offsets = [1, 2, 0], sizes = [8, 16, 4], strides = [1, 1, 1]} : vector<10x18x4xf32> to vector<8x16x4xf32>
    %31 = vector.extract_strided_slice %24 {offsets = [2, 0, 0], sizes = [8, 16, 4], strides = [1, 1, 1]} : vector<10x18x4xf32> to vector<8x16x4xf32>
    %32 = vector.extract_strided_slice %24 {offsets = [2, 1, 0], sizes = [8, 16, 4], strides = [1, 1, 1]} : vector<10x18x4xf32> to vector<8x16x4xf32>
    %33 = vector.extract_strided_slice %24 {offsets = [2, 2, 0], sizes = [8, 16, 4], strides = [1, 1, 1]} : vector<10x18x4xf32> to vector<8x16x4xf32>
    %34 = tpu.concatenate %25, %26, %27, %28, %29, %30, %31, %32, %33 in 2 : vector<8x16x4xf32>, vector<8x16x4xf32>, vector<8x16x4xf32>, vector<8x16x4xf32>, vector<8x16x4xf32>, vector<8x16x4xf32>, vector<8x16x4xf32>, vector<8x16x4xf32>, vector<8x16x4xf32> -> vector<8x16x36xf32>
    %35 = vector.shape_cast %34 : vector<8x16x36xf32> to vector<128x36xf32>
    %c0_13 = arith.constant 0 : index
    %c0_14 = arith.constant 0 : index
    %36 = vector.load %arg5[%c0_13, %c0_14] : memref<36x8xf32, #tpu.memory_space<vmem>>, vector<36x8xf32>
    %cst_15 = arith.constant dense<0.000000e+00> : vector<128x8xf32>
    %37 = tpu.matmul %35, %36, %cst_15 {dimension_numbers = #tpu.dot_dimension_numbers<[1], [0], [0], [1], [0, 0, 1, 1], [], []>} : vector<128x36xf32>, vector<36x8xf32>, vector<128x8xf32> -> vector<128x8xf32>
    %38 = vector.shape_cast %37 : vector<128x8xf32> to vector<1x8x16x8xf32>
    %c0_16 = arith.constant 0 : index
    %c0_17 = arith.constant 0 : index
    %c0_18 = arith.constant 0 : index
    %c0_19 = arith.constant 0 : index
    %39 = vector.load %arg6[%c0_16, %c0_17, %c0_18, %c0_19] : memref<1x8x16x8xf32, #tpu.memory_space<vmem>>, vector<1x8x16x8xf32>
    tpu.vector_store %arg6[%c0_16, %c0_17, %c0_18, %c0_19], %38 {strides = array<i32>} : memref<1x8x16x8xf32, #tpu.memory_space<vmem>>, vector<1x8x16x8xf32>,
    %cst_20 = arith.constant dense<0.000000e+00> : vector<8xf32>
    %40 = vector.multi_reduction <add>, %37, %cst_20 [0] : vector<128x8xf32> to vector<8xf32>
    %41 = vector.shape_cast %40 : vector<8xf32> to vector<1x8xf32>
    %42 = arith.mulf %37, %37 : vector<128x8xf32>
    %cst_21 = arith.constant dense<0.000000e+00> : vector<8xf32>
    %43 = vector.multi_reduction <add>, %42, %cst_21 [0] : vector<128x8xf32> to vector<8xf32>
    %44 = vector.shape_cast %43 : vector<8xf32> to vector<1x8xf32>
    %45 = tpu.concatenate %41, %44 in 0 : vector<1x8xf32>, vector<1x8xf32> -> vector<2x8xf32>
    %46 = vector.shape_cast %45 : vector<2x8xf32> to vector<1x1x2x8xf32>
    %c0_22 = arith.constant 0 : index
    %c0_23 = arith.constant 0 : index
    %c0_24 = arith.constant 0 : index
    %c0_25 = arith.constant 0 : index
    %47 = vector.load %arg7[%c0_22, %c0_23, %c0_24, %c0_25] : memref<1x1x2x8xf32, #tpu.memory_space<vmem>>, vector<1x1x2x8xf32>
    tpu.vector_store %arg7[%c0_22, %c0_23, %c0_24, %c0_25], %46 {strides = array<i32>} : memref<1x1x2x8xf32, #tpu.memory_space<vmem>>, vector<1x1x2x8xf32>,
    return
  }
  func.func @transform_0(%arg0: i32, %arg1: i32) -> (i32, i32, i32, i32) {
    %c8_i32 = arith.constant 8 : i32
    %0 = arith.muli %arg1, %c8_i32 : i32
    %c1_i32 = arith.constant 1 : i32
    %1 = arith.subi %0, %c1_i32 : i32
    %c0_i32 = arith.constant 0 : i32
    %2 = arith.maxsi %1, %c0_i32 : i32
    %c0_i32_0 = arith.constant 0 : i32
    %c0_i32_1 = arith.constant 0 : i32
    %c0_i32_2 = arith.constant 0 : i32
    return %arg0, %2, %c0_i32_0, %c0_i32_1 : i32, i32, i32, i32
  }
  func.func @transform_1(%arg0: i32, %arg1: i32) -> (i32, i32, i32, i32) {
    %c0_i32 = arith.constant 0 : i32
    %c0_i32_0 = arith.constant 0 : i32
    %c0_i32_1 = arith.constant 0 : i32
    return %arg0, %arg1, %c0_i32, %c0_i32_0 : i32, i32, i32, i32
  }
  func.func @transform_2(%arg0: i32, %arg1: i32) -> (i32, i32, i32, i32) {
    %c8_i32 = arith.constant 8 : i32
    %0 = arith.muli %arg1, %c8_i32 : i32
    %c8_i32_0 = arith.constant 8 : i32
    %1 = arith.addi %0, %c8_i32_0 : i32
    %c15_i32 = arith.constant 15 : i32
    %2 = arith.minsi %1, %c15_i32 : i32
    %c0_i32 = arith.constant 0 : i32
    %c0_i32_1 = arith.constant 0 : i32
    %c0_i32_2 = arith.constant 0 : i32
    return %arg0, %2, %c0_i32, %c0_i32_1 : i32, i32, i32, i32
  }
  func.func @transform_3(%arg0: i32, %arg1: i32) -> (i32, i32) {
    %c0_i32 = arith.constant 0 : i32
    %c0_i32_0 = arith.constant 0 : i32
    %c0_i32_1 = arith.constant 0 : i32
    return %c0_i32, %c0_i32_0 : i32, i32
  }
  func.func @transform_4(%arg0: i32, %arg1: i32) -> (i32, i32, i32, i32) {
    %c0_i32 = arith.constant 0 : i32
    %c0_i32_0 = arith.constant 0 : i32
    %c0_i32_1 = arith.constant 0 : i32
    return %arg0, %arg1, %c0_i32, %c0_i32_0 : i32, i32, i32, i32
  }
  func.func @transform_5(%arg0: i32, %arg1: i32) -> (i32, i32, i32, i32) {
    %c0_i32 = arith.constant 0 : i32
    %c0_i32_0 = arith.constant 0 : i32
    %c0_i32_1 = arith.constant 0 : i32
    return %arg0, %arg1, %c0_i32, %c0_i32_0 : i32, i32, i32, i32
  }
}

</mosaic_0001>

<llo_original>
// kernel: tpu_custom_call.1
$region0: #{tpu_custom_call.1}
  #allocation0 [shape = 'u32[]', space=smem, size = 0x4, offset = 0x4, fixed_abs, tag = 'smem constant byte address 0x4 - core index']
  #allocation1 [shape = 'u32[144,128]{1,0:T(1,128)}', space=vmem, size = 0x12000, scoped, tag = 'internal scratch']
  %s0 = inlined_call_operand.vmem [shape: f32[2,16,16,4], index: 0, kind: input, shape index: {}]
  %s1 = inlined_call_operand.vmem [shape: f32[2,16,16,4], index: 1, kind: input, shape index: {}]
  %s2 = inlined_call_operand.vmem [shape: f32[2,16,16,4], index: 2, kind: input, shape index: {}]
  %s3 = inlined_call_operand.vmem [shape: f32[36,8], index: 3, kind: input, shape index: {}]
  %s4 = inlined_call_operand.vmem [shape: f32[2,16,16,8], index: 4, kind: output, shape index: {0}]
  %s5 = inlined_call_operand.hbm [shape: f32[2,2,2,8], index: 5, kind: output, shape index: {1}]
  %6 = xla_tuple %s4, %s5
  %s7 = sld [smem:[#allocation0]]
  $region57: #{tpu_custom_call.1} parent=0
    _
  %s9 = ssub.s32 1, %s7
  %s10 = scalar_select 0, %s9, %s7
  $region1: #{tpu_custom_call.1} parent=0
    #allocation2 [shape = 'u8[2048]{0}', space=vmem, size = 0x800, scoped, tag = 'output window, operand 1']
    #allocation3 [shape = 's32[2]{0}', space=sflag, size = 0x8, scoped, tag = 'scoped memory for tpu_custom_call.1']
    %11 = vsyncpa [#allocation3], 0
    %s12 = scalar_lea.sflag [#allocation3], 1
    %13 = vsyncpa %s12, 0
    loop: start=0, step=1, limit=6
    $region2: #{tpu_custom_call.1} parent=1 // loop_pre_header
      _
    $region3: #{tpu_custom_call.1} parent=1 // loop_header
      %s15 = sphi 0, %s19
      %p16 = scmp.ge.s32.totalorder %s15, 6
      %s22 = sphi 0, %s34
      %s23 = sphi 0, %s30
      %s24 = sphi 0, %s22
      %s25 = sphi 0, %s23
      %s26 = sphi 0, %s24
      %s27 = sphi 0, %s25
      %s47 = sphi 0, %s49
      %s50 = sphi 0, %s47
      %s51 = sphi 0, %s50
      %s67 = sphi 0, %s51
      %s75 = sphi 0, %s77
      %s78 = sphi 0, %s75
      %s79 = sphi 0, %s78
      %s95 = sphi 0, %s79
      %s111 = sphi 0, %s113
      %s114 = sphi 0, %s111
      %s115 = sphi 0, %s114
      %s131 = sphi 0, %s115
      %s135 = sphi 0, %s135
      %s137 = sphi 0, %s135
      %s138 = sphi 0, %s137
      %s152 = sphi 0, %s138
      %s160 = sphi 0, %s162
      %s163 = sphi 0, %s160
      %s164 = sphi 0, %s163
      %s180 = sphi 0, %s164
      %s188 = sphi 0, %s190
      %s191 = sphi 0, %s188
      %s192 = sphi 0, %s191
      %s208 = sphi 0, %s192
    $region4: #{tpu_custom_call.1} parent=1 // loop_header_branch
      %18 = sbr.rel (%p16) target = $region8
    $region5: #{tpu_custom_call.1} parent=1 // loop_body
      %s20 = ssub.s32 %s15, 1
      %s21 = ssub.s32 %s15, 2
      %s28 = sadd.s32 1, %s23
      %p29 = scmp.ge.s32.totalorder %s28, 2
      %s30 = scalar_select %p29, 0, %s28
      %s31 = sadd.s32 1, %s22
      %s32 = scalar_select %p29, %s31, %s22
      %p33 = scmp.ge.s32.totalorder %s32, 2
      %s34 = scalar_select %p33, 0, %s32
      %s35 = smul.u32 %s23, 8
      %s36 = ssub.s32 %s35, 1
      %p37 = scmp.gt.s32.totalorder %s36, 0
      %s38 = scalar_select %p37, %s36, 0
      %s39 = smul.u32 %s30, 8
      %s40 = ssub.s32 %s39, 1
      %p41 = scmp.gt.s32.totalorder %s40, 0
      %s42 = scalar_select %p41, %s40, 0
      %s43 = ssub.s32 %s22, %s34
      %s44 = ssub.s32 %s38, %s42
      %s45 = sor.u32 %s43, %s44
      %p46 = scmp.eq.s32.totalorder %s45, 0
      %s48 = sadd.s32 %s47, 1
      %s49 = scalar_select %p46, %s47, %s48
      %p52 = pneg %p46
      %p53 = scmp.eq.s32.totalorder %s15, 3
      %p54 = por %p52, %p53
      %p55 = scmp.ne.s32.totalorder %s47, %s50
      %p56 = scmp.eq.s32.totalorder %s15, 0
      %p57 = por %p55, %p56
      %p58 = scmp.ne.s32.totalorder %s47, %s50
      %p59 = scmp.eq.s32.totalorder %s20, 3
      %p60 = por %p58, %p59
      %p61 = scmp.ne.s32.totalorder %s50, %s51
      %p62 = scmp.eq.s32.totalorder %s20, 0
      %p63 = por %p61, %p62
      %p64 = scmp.ne.s32.totalorder %s50, %s51
      %p65 = scmp.eq.s32.totalorder %s21, 3
      %p66 = por %p64, %p65
      %p68 = scmp.ne.s32.totalorder %s51, %s67
      %p69 = scmp.eq.s32.totalorder %s21, 0
      %p70 = por %p68, %p69
      %s71 = ssub.s32 %s22, %s34
      %s72 = ssub.s32 %s23, %s30
      %s73 = sor.u32 %s71, %s72
      %p74 = scmp.eq.s32.totalorder %s73, 0
      %s76 = sadd.s32 %s75, 1
      %s77 = scalar_select %p74, %s75, %s76
      %p80 = pneg %p74
      %p81 = scmp.eq.s32.totalorder %s15, 3
      %p82 = por %p80, %p81
      %p83 = scmp.ne.s32.totalorder %s75, %s78
      %p84 = scmp.eq.s32.totalorder %s15, 0
      %p85 = por %p83, %p84
      %p86 = scmp.ne.s32.totalorder %s75, %s78
      %p87 = scmp.eq.s32.totalorder %s20, 3
      %p88 = por %p86, %p87
      %p89 = scmp.ne.s32.totalorder %s78, %s79
      %p90 = scmp.eq.s32.totalorder %s20, 0
      %p91 = por %p89, %p90
      %p92 = scmp.ne.s32.totalorder %s78, %s79
      %p93 = scmp.eq.s32.totalorder %s21, 3
      %p94 = por %p92, %p93
      %p96 = scmp.ne.s32.totalorder %s79, %s95
      %p97 = scmp.eq.s32.totalorder %s21, 0
      %p98 = por %p96, %p97
      %s99 = smul.u32 %s23, 8
      %s100 = sadd.s32 %s99, 8
      %p101 = scmp.lt.s32.totalorder %s100, 15
      %s102 = scalar_select %p101, %s100, 15
      %s103 = smul.u32 %s30, 8
      %s104 = sadd.s32 %s103, 8
      %p105 = scmp.lt.s32.totalorder %s104, 15
      %s106 = scalar_select %p105, %s104, 15
      %s107 = ssub.s32 %s22, %s34
      %s108 = ssub.s32 %s102, %s106
      %s109 = sor.u32 %s107, %s108
      %p110 = scmp.eq.s32.totalorder %s109, 0
      %s112 = sadd.s32 %s111, 1
      %s113 = scalar_select %p110, %s111, %s112
      %p116 = pneg %p110
      %p117 = scmp.eq.s32.totalorder %s15, 3
      %p118 = por %p116, %p117
      %p119 = scmp.ne.s32.totalorder %s111, %s114
      %p120 = scmp.eq.s32.totalorder %s15, 0
      %p121 = por %p119, %p120
      %p122 = scmp.ne.s32.totalorder %s111, %s114
      %p123 = scmp.eq.s32.totalorder %s20, 3
      %p124 = por %p122, %p123
      %p125 = scmp.ne.s32.totalorder %s114, %s115
      %p126 = scmp.eq.s32.totalorder %s20, 0
      %p127 = por %p125, %p126
      %p128 = scmp.ne.s32.totalorder %s114, %s115
      %p129 = scmp.eq.s32.totalorder %s21, 3
      %p130 = por %p128, %p129
      %p132 = scmp.ne.s32.totalorder %s115, %s131
      %p133 = scmp.eq.s32.totalorder %s21, 0
      %p134 = por %p132, %p133
      %s136 = sadd.s32 %s135, 1
      %p139 = scmp.eq.s32.totalorder %s15, 3
      %p140 = scmp.ne.s32.totalorder %s135, %s137
      %p141 = scmp.eq.s32.totalorder %s15, 0
      %p142 = por %p140, %p141
      %p143 = scmp.ne.s32.totalorder %s135, %s137
      %p144 = scmp.eq.s32.totalorder %s20, 3
      %p145 = por %p143, %p144
      %p146 = scmp.ne.s32.totalorder %s137, %s138
      %p147 = scmp.eq.s32.totalorder %s20, 0
      %p148 = por %p146, %p147
      %p149 = scmp.ne.s32.totalorder %s137, %s138
      %p150 = scmp.eq.s32.totalorder %s21, 3
      %p151 = por %p149, %p150
      %p153 = scmp.ne.s32.totalorder %s138, %s152
      %p154 = scmp.eq.s32.totalorder %s21, 0
      %p155 = por %p153, %p154
      %s156 = ssub.s32 %s22, %s34
      %s157 = ssub.s32 %s23, %s30
      %s158 = sor.u32 %s156, %s157
      %p159 = scmp.eq.s32.totalorder %s158, 0
      %s161 = sadd.s32 %s160, 1
      %s162 = scalar_select %p159, %s160, %s161
      %p165 = pneg %p159
      %p166 = scmp.eq.s32.totalorder %s15, 3
      %p167 = por %p165, %p166
      %p168 = scmp.ne.s32.totalorder %s160, %s163
      %p169 = scmp.eq.s32.totalorder %s15, 0
      %p170 = por %p168, %p169
      %p171 = scmp.ne.s32.totalorder %s160, %s163
      %p172 = scmp.eq.s32.totalorder %s20, 3
      %p173 = por %p171, %p172
      %p174 = scmp.ne.s32.totalorder %s163, %s164
      %p175 = scmp.eq.s32.totalorder %s20, 0
      %p176 = por %p174, %p175
      %p177 = scmp.ne.s32.totalorder %s163, %s164
      %p178 = scmp.eq.s32.totalorder %s21, 3
      %p179 = por %p177, %p178
      %p181 = scmp.ne.s32.totalorder %s164, %s180
      %p182 = scmp.eq.s32.totalorder %s21, 0
      %p183 = por %p181, %p182
      %s184 = ssub.s32 %s22, %s34
      %s185 = ssub.s32 %s23, %s30
      %s186 = sor.u32 %s184, %s185
      %p187 = scmp.eq.s32.totalorder %s186, 0
      %s189 = sadd.s32 %s188, 1
      %s190 = scalar_select %p187, %s188, %s189
      %p193 = pneg %p187
      %p194 = scmp.eq.s32.totalorder %s15, 3
      %p195 = por %p193, %p194
      %p196 = scmp.ne.s32.totalorder %s188, %s191
      %p197 = scmp.eq.s32.totalorder %s15, 0
      %p198 = por %p196, %p197
      %p199 = scmp.ne.s32.totalorder %s188, %s191
      %p200 = scmp.eq.s32.totalorder %s20, 3
      %p201 = por %p199, %p200
      %p202 = scmp.ne.s32.totalorder %s191, %s192
      %p203 = scmp.eq.s32.totalorder %s20, 0
      %p204 = por %p202, %p203
      %p205 = scmp.ne.s32.totalorder %s191, %s192
      %p206 = scmp.eq.s32.totalorder %s21, 3
      %p207 = por %p205, %p206
      %p209 = scmp.ne.s32.totalorder %s192, %s208
      %p210 = scmp.eq.s32.totalorder %s21, 0
      %p211 = por %p209, %p210
      %p212 = scmp.le.s32.totalorder 1, %s15
      %p213 = scmp.lt.s32.totalorder %s15, 5
      %p214 = pnand %p212, %p213
      %p215 = pneg %p214
      // Predicated region
      $region9: #{tpu_custom_call.1} parent=5 // pred_check
        _
      $region10: #{tpu_custom_call.1} parent=5 // pred_check_branch
        %217 = sbr.rel (%p214) target = $region12
      $region11: #{tpu_custom_call.1} parent=5 // pred_region
        %s218 = ssub.s32 %s15, 1
        // Predicated region
        $region13: #{tpu_custom_call.1} parent=11 // pred_check
          %p219 = pneg %p148
        $region14: #{tpu_custom_call.1} parent=11 // pred_check_branch
          %221 = sbr.rel (%p219) target = $region16
        $region15: #{tpu_custom_call.1} parent=11 // pred_region
          _
        $region16: #{tpu_custom_call.1} parent=11 // pred_fallthru
          _
      $region12: #{tpu_custom_call.1} parent=5 // pred_fallthru
        _
      %p222 = scmp.lt.s32.totalorder %s15, 4
      // Predicated region
      $region17: #{tpu_custom_call.1} parent=5 // pred_check
        %p223 = pneg %p222
      $region18: #{tpu_custom_call.1} parent=5 // pred_check_branch
        %225 = sbr.rel (%p223) target = $region20
      $region19: #{tpu_custom_call.1} parent=5 // pred_region
        // Predicated region
        $region21: #{tpu_custom_call.1} parent=19 // pred_check
          %p226 = pneg %p57
        $region22: #{tpu_custom_call.1} parent=19 // pred_check_branch
          %228 = sbr.rel (%p226) target = $region24
        $region23: #{tpu_custom_call.1} parent=19 // pred_region
          %s229 = smul.u32 %s23, 8
          %s230 = ssub.s32 %s229, 1
          %p231 = scmp.gt.s32.totalorder %s230, 0
          %s232 = scalar_select %p231, %s230, 0
          %p233 = scmp.lt.s32.totalorder %s22, 1
          %s234 = scalar_select %p233, %s22, 1
          %p235 = scmp.lt.s32.totalorder %s232, 15
          %s236 = scalar_select %p235, %s232, 15
          %s237 = smul.addr %s236, 2
          %s238 = smul.addr %s234, 32
          %s239 = sadd.s32 %s237, %s238
          %s240 = smul.addr %s239, 8
          %s241 = scalar_lea.vmem %s0, %s240
          %s242 = smul.u32 %s23, 8
          %s243 = ssub.s32 %s242, 1
          %p244 = scmp.gt.s32.totalorder %s243, 0
          %s245 = scalar_select %p244, %s243, 0
        $region24: #{tpu_custom_call.1} parent=19 // pred_fallthru
          _
        // Predicated region
        $region25: #{tpu_custom_call.1} parent=19 // pred_check
          %p246 = pneg %p85
        $region26: #{tpu_custom_call.1} parent=19 // pred_check_branch
          %248 = sbr.rel (%p246) target = $region28
        $region27: #{tpu_custom_call.1} parent=19 // pred_region
          %s249 = smul.u32 8, %s23
          %p250 = scmp.lt.s32.totalorder %s22, 1
          %s251 = scalar_select %p250, %s22, 1
          %p252 = scmp.lt.s32.totalorder %s249, 15
          %s253 = scalar_select %p252, %s249, 15
          %s254 = smul.addr %s253, 2
          %s255 = smul.addr %s251, 32
          %s256 = sadd.s32 %s254, %s255
          %s257 = smul.addr %s256, 8
          %s258 = scalar_lea.vmem %s1, %s257
          %s259 = smul.u32 8, %s23
        $region28: #{tpu_custom_call.1} parent=19 // pred_fallthru
          _
        // Predicated region
        $region29: #{tpu_custom_call.1} parent=19 // pred_check
          %p260 = pneg %p121
        $region30: #{tpu_custom_call.1} parent=19 // pred_check_branch
          %262 = sbr.rel (%p260) target = $region32
        $region31: #{tpu_custom_call.1} parent=19 // pred_region
          %s263 = smul.u32 %s23, 8
          %s264 = sadd.s32 %s263, 8
          %p265 = scmp.lt.s32.totalorder %s264, 15
          %s266 = scalar_select %p265, %s264, 15
          %p267 = scmp.lt.s32.totalorder %s22, 1
          %s268 = scalar_select %p267, %s22, 1
          %p269 = scmp.lt.s32.totalorder %s266, 15
          %s270 = scalar_select %p269, %s266, 15
          %s271 = smul.addr %s270, 2
          %s272 = smul.addr %s268, 32
          %s273 = sadd.s32 %s271, %s272
          %s274 = smul.addr %s273, 8
          %s275 = scalar_lea.vmem %s2, %s274
          %s276 = smul.u32 %s23, 8
          %s277 = sadd.s32 %s276, 8
          %p278 = scmp.lt.s32.totalorder %s277, 15
          %s279 = scalar_select %p278, %s277, 15
        $region32: #{tpu_custom_call.1} parent=19 // pred_fallthru
          _
      $region20: #{tpu_custom_call.1} parent=5 // pred_fallthru
        _
      %p280 = scmp.le.s32.totalorder 1, %s15
      %p281 = scmp.lt.s32.totalorder %s15, 5
      %p282 = pnand %p280, %p281
      %p283 = pneg %p282
      // Predicated region
      $region33: #{tpu_custom_call.1} parent=5 // pred_check
        _
      $region34: #{tpu_custom_call.1} parent=5 // pred_check_branch
        %285 = sbr.rel (%p282) target = $region36
      $region35: #{tpu_custom_call.1} parent=5 // pred_region
        %s286 = ssub.s32 %s15, 1
        %s287 = smul.u32 %s25, 8
        %s288 = ssub.s32 %s287, 1
        %p289 = scmp.gt.s32.totalorder %s288, 0
        %s290 = scalar_select %p289, %s288, 0
        %p291 = scmp.lt.s32.totalorder %s24, 1
        %s292 = scalar_select %p291, %s24, 1
        %p293 = scmp.lt.s32.totalorder %s290, 15
        %s294 = scalar_select %p293, %s290, 15
        %s295 = smul.addr %s294, 2
        %s296 = smul.addr %s292, 32
        %s297 = sadd.s32 %s295, %s296
        %s298 = smul.addr %s297, 8
        %s299 = scalar_lea.vmem %s0, %s298
        %p300 = pneg %p63
        %p301 = pneg %p60
        %s302 = smul.u32 8, %s25
        %p303 = scmp.lt.s32.totalorder %s24, 1
        %s304 = scalar_select %p303, %s24, 1
        %p305 = scmp.lt.s32.totalorder %s302, 15
        %s306 = scalar_select %p305, %s302, 15
        %s307 = smul.addr %s306, 2
        %s308 = smul.addr %s304, 32
        %s309 = sadd.s32 %s307, %s308
        %s310 = smul.addr %s309, 8
        %s311 = scalar_lea.vmem %s1, %s310
        %p312 = pneg %p91
        %p313 = pneg %p88
        %s314 = smul.u32 %s25, 8
        %s315 = sadd.s32 %s314, 8
        %p316 = scmp.lt.s32.totalorder %s315, 15
        %s317 = scalar_select %p316, %s315, 15
        %p318 = scmp.lt.s32.totalorder %s24, 1
        %s319 = scalar_select %p318, %s24, 1
        %p320 = scmp.lt.s32.totalorder %s317, 15
        %s321 = scalar_select %p320, %s317, 15
        %s322 = smul.addr %s321, 2
        %s323 = smul.addr %s319, 32
        %s324 = sadd.s32 %s322, %s323
        %s325 = smul.addr %s324, 8
        %s326 = scalar_lea.vmem %s2, %s325
        %p327 = pneg %p127
        %p328 = pneg %p124
        %p329 = pneg %p148
        %p330 = pneg %p145
        %p331 = pneg %p176
        %p332 = pneg %p173
        %s333 = smul.u32 8, %s25
        %p334 = scmp.lt.s32.totalorder %s24, 1
        %s335 = scalar_select %p334, %s24, 1
        %p336 = scmp.lt.s32.totalorder %s333, 15
        %s337 = scalar_select %p336, %s333, 15
        %s338 = smul.addr %s337, 2
        %s339 = smul.addr %s335, 32
        %s340 = sadd.s32 %s338, %s339
        %s341 = smul.addr %s340, 8
        %s342 = scalar_lea.vmem %s4, %s341
        %p343 = pneg %p204
        %p344 = pneg %p201
        %s345 = sand.u32 %s191, 1
        %s346 = scalar_lea.sflag [#allocation3], %s345
        %s347 = sand.u32 %s191, 1
        %s348 = smul.addr %s347, 2
        %s349 = scalar_lea.vmem [#allocation2], %s348
        %s350 = smul.u32 %s25, 8
        %s351 = ssub.s32 %s350, 1
        %p352 = scmp.gt.s32.totalorder %s351, 0
        %s353 = scalar_select %p352, %s351, 0
        %p354 = scmp.lt.s32.totalorder %s24, 1
        %s355 = scalar_select %p354, %s24, 1
        %p356 = scmp.lt.s32.totalorder %s353, 15
        %s357 = scalar_select %p356, %s353, 15
        %s358 = smul.addr %s357, 2
        %s359 = smul.addr %s355, 32
        %s360 = sadd.s32 %s358, %s359
        %s361 = smul.addr %s360, 8
        %s362 = scalar_lea.vmem %s0, %s361
        %s363 = smul.u32 %s25, 8
        %s364 = ssub.s32 %s363, 1
        %p365 = scmp.gt.s32.totalorder %s364, 0
        %s366 = scalar_select %p365, %s364, 0
        %s367 = smul.u32 8, %s25
        %p368 = scmp.lt.s32.totalorder %s24, 1
        %s369 = scalar_select %p368, %s24, 1
        %p370 = scmp.lt.s32.totalorder %s367, 15
        %s371 = scalar_select %p370, %s367, 15
        %s372 = smul.addr %s371, 2
        %s373 = smul.addr %s369, 32
        %s374 = sadd.s32 %s372, %s373
        %s375 = smul.addr %s374, 8
        %s376 = scalar_lea.vmem %s1, %s375
        %s377 = smul.u32 8, %s25
        %s378 = smul.u32 %s25, 8
        %s379 = sadd.s32 %s378, 8
        %p380 = scmp.lt.s32.totalorder %s379, 15
        %s381 = scalar_select %p380, %s379, 15
        %p382 = scmp.lt.s32.totalorder %s24, 1
        %s383 = scalar_select %p382, %s24, 1
        %p384 = scmp.lt.s32.totalorder %s381, 15
        %s385 = scalar_select %p384, %s381, 15
        %s386 = smul.addr %s385, 2
        %s387 = smul.addr %s383, 32
        %s388 = sadd.s32 %s386, %s387
        %s389 = smul.addr %s388, 8
        %s390 = scalar_lea.vmem %s2, %s389
        %s391 = smul.u32 %s25, 8
        %s392 = sadd.s32 %s391, 8
        %p393 = scmp.lt.s32.totalorder %s392, 15
        %s394 = scalar_select %p393, %s392, 15
        %s395 = smul.u32 8, %s25
        %p396 = scmp.lt.s32.totalorder %s24, 1
        %s397 = scalar_select %p396, %s24, 1
        %p398 = scmp.lt.s32.totalorder %s395, 15
        %s399 = scalar_select %p398, %s395, 15
        %s400 = smul.addr %s399, 2
        %s401 = smul.addr %s397, 32
        %s402 = sadd.s32 %s400, %s401
        %s403 = smul.addr %s402, 8
        %s404 = scalar_lea.vmem %s4, %s403
        %s405 = smul.u32 8, %s25
        %v406 = vld [vmem:[%s362] sm:$0xff]
        %v407 = vld [vmem:[%s362 + $0x8] sm:$0xff]
        %v408 = vld [vmem:[%s376] sm:$0xff]
        %v409 = vld [vmem:[%s376 + $0x8] sm:$0xff]
        %v410 = vld [vmem:[%s376 + $0x10] sm:$0xff]
        %v411 = vld [vmem:[%s376 + $0x18] sm:$0xff]
        %v412 = vld [vmem:[%s376 + $0x20] sm:$0xff]
        %v413 = vld [vmem:[%s376 + $0x28] sm:$0xff]
        %v414 = vld [vmem:[%s376 + $0x30] sm:$0xff]
        %v415 = vld [vmem:[%s376 + $0x38] sm:$0xff]
        %v416 = vld [vmem:[%s376 + $0x40] sm:$0xff]
        %v417 = vld [vmem:[%s376 + $0x48] sm:$0xff]
        %v418 = vld [vmem:[%s376 + $0x50] sm:$0xff]
        %v419 = vld [vmem:[%s376 + $0x58] sm:$0xff]
        %v420 = vld [vmem:[%s376 + $0x60] sm:$0xff]
        %v421 = vld [vmem:[%s376 + $0x68] sm:$0xff]
        %v422 = vld [vmem:[%s376 + $0x70] sm:$0xff]
        %v423 = vld [vmem:[%s376 + $0x78] sm:$0xff]
        %v424 = vld [vmem:[%s390] sm:$0xff]
        %v425 = vld [vmem:[%s390 + $0x8] sm:$0xff]
        %p426 = scmp.gt.s32.totalorder %s25, 0
        %s427 = scalar_select %p426, 1, 0
        %v428 = vstv %s427
        %vm429 = vcmp.eq.s32.totalorder %v428, 1
        %p430 = scmp.lt.s32.totalorder %s25, 1
        %s431 = scalar_select %p430, 1, 0
        %v432 = vstv %s431
        %vm433 = vcmp.eq.s32.totalorder %v432, 1
        %v434 = vsel %vm429, 1, 0
        %v435 = vsel %vm433, 1, 0
        %vm436 = vcmp.eq.s32.totalorder %v434, 1
        %vm437 = vcmp.eq.s32.totalorder %v435, 1
        %v438 = vsel %vm436, %v406, 0.0
        %v439 = vsel %vm436, %v407, 0.0
        %v440 = vsel 1, %v408, 0.0
        %v441 = vsel 1, %v409, 0.0
        %v442 = vsel 1, %v410, 0.0
        %v443 = vsel 1, %v411, 0.0
        %v444 = vsel 1, %v412, 0.0
        %v445 = vsel 1, %v413, 0.0
        %v446 = vsel 1, %v414, 0.0
        %v447 = vsel 1, %v415, 0.0
        %v448 = vsel 1, %v416, 0.0
        %v449 = vsel 1, %v417, 0.0
        %v450 = vsel 1, %v418, 0.0
        %v451 = vsel 1, %v419, 0.0
        %v452 = vsel 1, %v420, 0.0
        %v453 = vsel 1, %v421, 0.0
        %v454 = vsel 1, %v422, 0.0
        %v455 = vsel 1, %v423, 0.0
        %v456 = vsel %vm437, %v424, 0.0
        %v457 = vsel %vm437, %v425, 0.0
        %vm478 = vcmask 1040384
        %v479 = vrot.slane %v438, 7
        %v480 = vrot.slane %v439, 7
        %v481 = vsel %vm478, %v479, %v480
        %v482 = vrot.slane %v440, 7
        %v483 = vrot.slane %v441, 7
        %v484 = vsel %vm478, %v482, %v483
        %v485 = vrot.slane %v442, 7
        %v486 = vrot.slane %v443, 7
        %v487 = vsel %vm478, %v485, %v486
        %v488 = vrot.slane %v444, 7
        %v489 = vrot.slane %v445, 7
        %v490 = vsel %vm478, %v488, %v489
        %v491 = vrot.slane %v446, 7
        %v492 = vrot.slane %v447, 7
        %v493 = vsel %vm478, %v491, %v492
        %v494 = vrot.slane %v448, 7
        %v495 = vrot.slane %v449, 7
        %v496 = vsel %vm478, %v494, %v495
        %v497 = vrot.slane %v450, 7
        %v498 = vrot.slane %v451, 7
        %v499 = vsel %vm478, %v497, %v498
        %v500 = vrot.slane %v452, 7
        %v501 = vrot.slane %v453, 7
        %v502 = vsel %vm478, %v500, %v501
        %v503 = vrot.slane %v454, 7
        %v504 = vrot.slane %v455, 7
        %v505 = vsel %vm478, %v503, %v504
        %v506 = vrot.slane %v456, 7
        %v507 = vrot.slane %v457, 7
        %v508 = vsel %vm478, %v506, %v507
        %v537 = vsel %vm478, 0.0, %v479
        %v538 = vsel %vm478, 0.0, %v482
        %v539 = vsel %vm478, 0.0, %v485
        %v540 = vsel %vm478, 0.0, %v488
        %v541 = vsel %vm478, 0.0, %v491
        %v542 = vsel %vm478, 0.0, %v494
        %v543 = vsel %vm478, 0.0, %v497
        %v544 = vsel %vm478, 0.0, %v500
        %v545 = vsel %vm478, 0.0, %v503
        %v546 = vsel %vm478, 0.0, %v506
        %v547 = vsel %vm478, %v480, 0.0
        %v548 = vsel %vm478, %v483, 0.0
        %v549 = vsel %vm478, %v486, 0.0
        %v550 = vsel %vm478, %v489, 0.0
        %v551 = vsel %vm478, %v492, 0.0
        %v552 = vsel %vm478, %v495, 0.0
        %v553 = vsel %vm478, %v498, 0.0
        %v554 = vsel %vm478, %v501, 0.0
        %v555 = vsel %vm478, %v504, 0.0
        %v556 = vsel %vm478, %v507, 0.0
        %vm573 = vcmask 1046528
        %v574 = vrot.slane %v537, 1
        %v575 = vrot.slane %v481, 1
        %v576 = vsel %vm573, %v574, %v575
        %v577 = vrot.slane %v547, 1
        %v578 = vsel %vm573, %v575, %v577
        %v579 = vrot.slane %v538, 1
        %v580 = vrot.slane %v484, 1
        %v581 = vsel %vm573, %v579, %v580
        %v582 = vrot.slane %v548, 1
        %v583 = vsel %vm573, %v580, %v582
        %v584 = vrot.slane %v539, 1
        %v585 = vrot.slane %v487, 1
        %v586 = vsel %vm573, %v584, %v585
        %v587 = vrot.slane %v549, 1
        %v588 = vsel %vm573, %v585, %v587
        %v589 = vrot.slane %v540, 1
        %v590 = vrot.slane %v490, 1
        %v591 = vsel %vm573, %v589, %v590
        %v592 = vrot.slane %v550, 1
        %v593 = vsel %vm573, %v590, %v592
        %v594 = vrot.slane %v541, 1
        %v595 = vrot.slane %v493, 1
        %v596 = vsel %vm573, %v594, %v595
        %v597 = vrot.slane %v551, 1
        %v598 = vsel %vm573, %v595, %v597
        %v599 = vrot.slane %v542, 1
        %v600 = vrot.slane %v496, 1
        %v601 = vsel %vm573, %v599, %v600
        %v602 = vrot.slane %v552, 1
        %v603 = vsel %vm573, %v600, %v602
        %v604 = vrot.slane %v543, 1
        %v605 = vrot.slane %v499, 1
        %v606 = vsel %vm573, %v604, %v605
        %v607 = vrot.slane %v553, 1
        %v608 = vsel %vm573, %v605, %v607
        %v609 = vrot.slane %v544, 1
        %v610 = vrot.slane %v502, 1
        %v611 = vsel %vm573, %v609, %v610
        %v612 = vrot.slane %v554, 1
        %v613 = vsel %vm573, %v610, %v612
        %614 = vrot.lane.b32.xlu0 %v576, 4
        %v615 = vpop.permute.xlu0 %614
        %616 = vrot.lane.b32.xlu0 %v578, 4
        %v617 = vpop.permute.xlu0 %616
        %618 = vrot.lane.b32.xlu0 %v581, 4
        %v619 = vpop.permute.xlu0 %618
        %620 = vrot.lane.b32.xlu0 %v583, 4
        %v621 = vpop.permute.xlu0 %620
        %622 = vrot.lane.b32.xlu0 %v586, 4
        %v623 = vpop.permute.xlu0 %622
        %624 = vrot.lane.b32.xlu0 %v588, 4
        %v625 = vpop.permute.xlu0 %624
        %626 = vrot.lane.b32.xlu0 %v591, 4
        %v627 = vpop.permute.xlu0 %626
        %628 = vrot.lane.b32.xlu0 %v593, 4
        %v629 = vpop.permute.xlu0 %628
        %630 = vrot.lane.b32.xlu0 %v596, 4
        %v631 = vpop.permute.xlu0 %630
        %632 = vrot.lane.b32.xlu0 %v598, 4
        %v633 = vpop.permute.xlu0 %632
        %634 = vrot.lane.b32.xlu0 %v601, 4
        %v635 = vpop.permute.xlu0 %634
        %636 = vrot.lane.b32.xlu0 %v603, 4
        %v637 = vpop.permute.xlu0 %636
        %638 = vrot.lane.b32.xlu0 %v606, 4
        %v639 = vpop.permute.xlu0 %638
        %640 = vrot.lane.b32.xlu0 %v608, 4
        %v641 = vpop.permute.xlu0 %640
        %642 = vrot.lane.b32.xlu0 %v611, 4
        %v643 = vpop.permute.xlu0 %642
        %644 = vrot.lane.b32.xlu0 %v613, 4
        %v645 = vpop.permute.xlu0 %644
        %vm662 = vcmask 1045504
        %v663 = vrot.slane %v537, 2
        %v664 = vrot.slane %v481, 2
        %v665 = vsel %vm662, %v663, %v664
        %v666 = vrot.slane %v547, 2
        %v667 = vsel %vm662, %v664, %v666
        %v668 = vrot.slane %v538, 2
        %v669 = vrot.slane %v484, 2
        %v670 = vsel %vm662, %v668, %v669
        %v671 = vrot.slane %v548, 2
        %v672 = vsel %vm662, %v669, %v671
        %v673 = vrot.slane %v539, 2
        %v674 = vrot.slane %v487, 2
        %v675 = vsel %vm662, %v673, %v674
        %v676 = vrot.slane %v549, 2
        %v677 = vsel %vm662, %v674, %v676
        %v678 = vrot.slane %v540, 2
        %v679 = vrot.slane %v490, 2
        %v680 = vsel %vm662, %v678, %v679
        %v681 = vrot.slane %v550, 2
        %v682 = vsel %vm662, %v679, %v681
        %v683 = vrot.slane %v541, 2
        %v684 = vrot.slane %v493, 2
        %v685 = vsel %vm662, %v683, %v684
        %v686 = vrot.slane %v551, 2
        %v687 = vsel %vm662, %v684, %v686
        %v688 = vrot.slane %v542, 2
        %v689 = vrot.slane %v496, 2
        %v690 = vsel %vm662, %v688, %v689
        %v691 = vrot.slane %v552, 2
        %v692 = vsel %vm662, %v689, %v691
        %v693 = vrot.slane %v543, 2
        %v694 = vrot.slane %v499, 2
        %v695 = vsel %vm662, %v693, %v694
        %v696 = vrot.slane %v553, 2
        %v697 = vsel %vm662, %v694, %v696
        %v698 = vrot.slane %v544, 2
        %v699 = vrot.slane %v502, 2
        %v700 = vsel %vm662, %v698, %v699
        %v701 = vrot.slane %v554, 2
        %v702 = vsel %vm662, %v699, %v701
        %703 = vrot.lane.b32.xlu0 %v665, 8
        %v704 = vpop.permute.xlu0 %703
        %705 = vrot.lane.b32.xlu0 %v667, 8
        %v706 = vpop.permute.xlu0 %705
        %707 = vrot.lane.b32.xlu0 %v670, 8
        %v708 = vpop.permute.xlu0 %707
        %709 = vrot.lane.b32.xlu0 %v672, 8
        %v710 = vpop.permute.xlu0 %709
        %711 = vrot.lane.b32.xlu0 %v675, 8
        %v712 = vpop.permute.xlu0 %711
        %713 = vrot.lane.b32.xlu0 %v677, 8
        %v714 = vpop.permute.xlu0 %713
        %715 = vrot.lane.b32.xlu0 %v680, 8
        %v716 = vpop.permute.xlu0 %715
        %717 = vrot.lane.b32.xlu0 %v682, 8
        %v718 = vpop.permute.xlu0 %717
        %719 = vrot.lane.b32.xlu0 %v685, 8
        %v720 = vpop.permute.xlu0 %719
        %721 = vrot.lane.b32.xlu0 %v687, 8
        %v722 = vpop.permute.xlu0 %721
        %723 = vrot.lane.b32.xlu0 %v690, 8
        %v724 = vpop.permute.xlu0 %723
        %725 = vrot.lane.b32.xlu0 %v692, 8
        %v726 = vpop.permute.xlu0 %725
        %727 = vrot.lane.b32.xlu0 %v695, 8
        %v728 = vpop.permute.xlu0 %727
        %729 = vrot.lane.b32.xlu0 %v697, 8
        %v730 = vpop.permute.xlu0 %729
        %731 = vrot.lane.b32.xlu0 %v700, 8
        %v732 = vpop.permute.xlu0 %731
        %733 = vrot.lane.b32.xlu0 %v702, 8
        %v734 = vpop.permute.xlu0 %733
        %752 = vrot.lane.b32.xlu0 %v538, 12
        %v753 = vpop.permute.xlu0 %752
        %754 = vrot.lane.b32.xlu0 %v484, 12
        %v755 = vpop.permute.xlu0 %754
        %756 = vrot.lane.b32.xlu0 %v539, 12
        %v757 = vpop.permute.xlu0 %756
        %758 = vrot.lane.b32.xlu0 %v487, 12
        %v759 = vpop.permute.xlu0 %758
        %760 = vrot.lane.b32.xlu0 %v540, 12
        %v761 = vpop.permute.xlu0 %760
        %762 = vrot.lane.b32.xlu0 %v490, 12
        %v763 = vpop.permute.xlu0 %762
        %764 = vrot.lane.b32.xlu0 %v541, 12
        %v765 = vpop.permute.xlu0 %764
        %766 = vrot.lane.b32.xlu0 %v493, 12
        %v767 = vpop.permute.xlu0 %766
        %768 = vrot.lane.b32.xlu0 %v542, 12
        %v769 = vpop.permute.xlu0 %768
        %770 = vrot.lane.b32.xlu0 %v496, 12
        %v771 = vpop.permute.xlu0 %770
        %772 = vrot.lane.b32.xlu0 %v543, 12
        %v773 = vpop.permute.xlu0 %772
        %774 = vrot.lane.b32.xlu0 %v499, 12
        %v775 = vpop.permute.xlu0 %774
        %776 = vrot.lane.b32.xlu0 %v544, 12
        %v777 = vpop.permute.xlu0 %776
        %778 = vrot.lane.b32.xlu0 %v502, 12
        %v779 = vpop.permute.xlu0 %778
        %780 = vrot.lane.b32.xlu0 %v545, 12
        %v781 = vpop.permute.xlu0 %780
        %782 = vrot.lane.b32.xlu0 %v505, 12
        %v783 = vpop.permute.xlu0 %782
        %v801 = vrot.slane %v545, 1
        %v802 = vrot.slane %v505, 1
        %v803 = vsel %vm573, %v801, %v802
        %v804 = vrot.slane %v555, 1
        %v805 = vsel %vm573, %v802, %v804
        %806 = vrot.lane.b32.xlu0 %v581, 16
        %v807 = vpop.permute.xlu0 %806
        %808 = vrot.lane.b32.xlu0 %v583, 16
        %v809 = vpop.permute.xlu0 %808
        %810 = vrot.lane.b32.xlu0 %v586, 16
        %v811 = vpop.permute.xlu0 %810
        %812 = vrot.lane.b32.xlu0 %v588, 16
        %v813 = vpop.permute.xlu0 %812
        %814 = vrot.lane.b32.xlu0 %v591, 16
        %v815 = vpop.permute.xlu0 %814
        %816 = vrot.lane.b32.xlu0 %v593, 16
        %v817 = vpop.permute.xlu0 %816
        %818 = vrot.lane.b32.xlu0 %v596, 16
        %v819 = vpop.permute.xlu0 %818
        %820 = vrot.lane.b32.xlu0 %v598, 16
        %v821 = vpop.permute.xlu0 %820
        %822 = vrot.lane.b32.xlu0 %v601, 16
        %v823 = vpop.permute.xlu0 %822
        %824 = vrot.lane.b32.xlu0 %v603, 16
        %v825 = vpop.permute.xlu0 %824
        %826 = vrot.lane.b32.xlu0 %v606, 16
        %v827 = vpop.permute.xlu0 %826
        %828 = vrot.lane.b32.xlu0 %v608, 16
        %v829 = vpop.permute.xlu0 %828
        %830 = vrot.lane.b32.xlu0 %v611, 16
        %v831 = vpop.permute.xlu0 %830
        %832 = vrot.lane.b32.xlu0 %v613, 16
        %v833 = vpop.permute.xlu0 %832
        %834 = vrot.lane.b32.xlu0 %v803, 16
        %v835 = vpop.permute.xlu0 %834
        %836 = vrot.lane.b32.xlu0 %v805, 16
        %v837 = vpop.permute.xlu0 %836
        %v854 = vrot.slane %v545, 2
        %v855 = vrot.slane %v505, 2
        %v856 = vsel %vm662, %v854, %v855
        %v857 = vrot.slane %v555, 2
        %v858 = vsel %vm662, %v855, %v857
        %859 = vrot.lane.b32.xlu0 %v670, 20
        %v860 = vpop.permute.xlu0 %859
        %861 = vrot.lane.b32.xlu0 %v672, 20
        %v862 = vpop.permute.xlu0 %861
        %863 = vrot.lane.b32.xlu0 %v675, 20
        %v864 = vpop.permute.xlu0 %863
        %865 = vrot.lane.b32.xlu0 %v677, 20
        %v866 = vpop.permute.xlu0 %865
        %867 = vrot.lane.b32.xlu0 %v680, 20
        %v868 = vpop.permute.xlu0 %867
        %869 = vrot.lane.b32.xlu0 %v682, 20
        %v870 = vpop.permute.xlu0 %869
        %871 = vrot.lane.b32.xlu0 %v685, 20
        %v872 = vpop.permute.xlu0 %871
        %873 = vrot.lane.b32.xlu0 %v687, 20
        %v874 = vpop.permute.xlu0 %873
        %875 = vrot.lane.b32.xlu0 %v690, 20
        %v876 = vpop.permute.xlu0 %875
        %877 = vrot.lane.b32.xlu0 %v692, 20
        %v878 = vpop.permute.xlu0 %877
        %879 = vrot.lane.b32.xlu0 %v695, 20
        %v880 = vpop.permute.xlu0 %879
        %881 = vrot.lane.b32.xlu0 %v697, 20
        %v882 = vpop.permute.xlu0 %881
        %883 = vrot.lane.b32.xlu0 %v700, 20
        %v884 = vpop.permute.xlu0 %883
        %885 = vrot.lane.b32.xlu0 %v702, 20
        %v886 = vpop.permute.xlu0 %885
        %887 = vrot.lane.b32.xlu0 %v856, 20
        %v888 = vpop.permute.xlu0 %887
        %889 = vrot.lane.b32.xlu0 %v858, 20
        %v890 = vpop.permute.xlu0 %889
        %908 = vrot.lane.b32.xlu0 %v539, 24
        %v909 = vpop.permute.xlu0 %908
        %910 = vrot.lane.b32.xlu0 %v487, 24
        %v911 = vpop.permute.xlu0 %910
        %912 = vrot.lane.b32.xlu0 %v540, 24
        %v913 = vpop.permute.xlu0 %912
        %914 = vrot.lane.b32.xlu0 %v490, 24
        %v915 = vpop.permute.xlu0 %914
        %916 = vrot.lane.b32.xlu0 %v541, 24
        %v917 = vpop.permute.xlu0 %916
        %918 = vrot.lane.b32.xlu0 %v493, 24
        %v919 = vpop.permute.xlu0 %918
        %920 = vrot.lane.b32.xlu0 %v542, 24
        %v921 = vpop.permute.xlu0 %920
        %922 = vrot.lane.b32.xlu0 %v496, 24
        %v923 = vpop.permute.xlu0 %922
        %924 = vrot.lane.b32.xlu0 %v543, 24
        %v925 = vpop.permute.xlu0 %924
        %926 = vrot.lane.b32.xlu0 %v499, 24
        %v927 = vpop.permute.xlu0 %926
        %928 = vrot.lane.b32.xlu0 %v544, 24
        %v929 = vpop.permute.xlu0 %928
        %930 = vrot.lane.b32.xlu0 %v502, 24
        %v931 = vpop.permute.xlu0 %930
        %932 = vrot.lane.b32.xlu0 %v545, 24
        %v933 = vpop.permute.xlu0 %932
        %934 = vrot.lane.b32.xlu0 %v505, 24
        %v935 = vpop.permute.xlu0 %934
        %936 = vrot.lane.b32.xlu0 %v546, 24
        %v937 = vpop.permute.xlu0 %936
        %938 = vrot.lane.b32.xlu0 %v508, 24
        %v939 = vpop.permute.xlu0 %938
        %v957 = vrot.slane %v546, 1
        %v958 = vrot.slane %v508, 1
        %v959 = vsel %vm573, %v957, %v958
        %v960 = vrot.slane %v556, 1
        %v961 = vsel %vm573, %v958, %v960
        %962 = vrot.lane.b32.xlu0 %v586, 28
        %v963 = vpop.permute.xlu0 %962
        %964 = vrot.lane.b32.xlu0 %v588, 28
        %v965 = vpop.permute.xlu0 %964
        %966 = vrot.lane.b32.xlu0 %v591, 28
        %v967 = vpop.permute.xlu0 %966
        %968 = vrot.lane.b32.xlu0 %v593, 28
        %v969 = vpop.permute.xlu0 %968
        %970 = vrot.lane.b32.xlu0 %v596, 28
        %v971 = vpop.permute.xlu0 %970
        %972 = vrot.lane.b32.xlu0 %v598, 28
        %v973 = vpop.permute.xlu0 %972
        %974 = vrot.lane.b32.xlu0 %v601, 28
        %v975 = vpop.permute.xlu0 %974
        %976 = vrot.lane.b32.xlu0 %v603, 28
        %v977 = vpop.permute.xlu0 %976
        %978 = vrot.lane.b32.xlu0 %v606, 28
        %v979 = vpop.permute.xlu0 %978
        %980 = vrot.lane.b32.xlu0 %v608, 28
        %v981 = vpop.permute.xlu0 %980
        %982 = vrot.lane.b32.xlu0 %v611, 28
        %v983 = vpop.permute.xlu0 %982
        %984 = vrot.lane.b32.xlu0 %v613, 28
        %v985 = vpop.permute.xlu0 %984
        %986 = vrot.lane.b32.xlu0 %v803, 28
        %v987 = vpop.permute.xlu0 %986
        %988 = vrot.lane.b32.xlu0 %v805, 28
        %v989 = vpop.permute.xlu0 %988
        %990 = vrot.lane.b32.xlu0 %v959, 28
        %v991 = vpop.permute.xlu0 %990
        %992 = vrot.lane.b32.xlu0 %v961, 28
        %v993 = vpop.permute.xlu0 %992
        %v1010 = vrot.slane %v546, 2
        %v1011 = vrot.slane %v508, 2
        %v1012 = vsel %vm662, %v1010, %v1011
        %v1013 = vrot.slane %v556, 2
        %v1014 = vsel %vm662, %v1011, %v1013
        %1015 = vrot.lane.b32.xlu0 %v675, 32
        %v1016 = vpop.permute.xlu0 %1015
        %1017 = vrot.lane.b32.xlu0 %v677, 32
        %v1018 = vpop.permute.xlu0 %1017
        %1019 = vrot.lane.b32.xlu0 %v680, 32
        %v1020 = vpop.permute.xlu0 %1019
        %1021 = vrot.lane.b32.xlu0 %v682, 32
        %v1022 = vpop.permute.xlu0 %1021
        %1023 = vrot.lane.b32.xlu0 %v685, 32
        %v1024 = vpop.permute.xlu0 %1023
        %1025 = vrot.lane.b32.xlu0 %v687, 32
        %v1026 = vpop.permute.xlu0 %1025
        %1027 = vrot.lane.b32.xlu0 %v690, 32
        %v1028 = vpop.permute.xlu0 %1027
        %1029 = vrot.lane.b32.xlu0 %v692, 32
        %v1030 = vpop.permute.xlu0 %1029
        %1031 = vrot.lane.b32.xlu0 %v695, 32
        %v1032 = vpop.permute.xlu0 %1031
        %1033 = vrot.lane.b32.xlu0 %v697, 32
        %v1034 = vpop.permute.xlu0 %1033
        %1035 = vrot.lane.b32.xlu0 %v700, 32
        %v1036 = vpop.permute.xlu0 %1035
        %1037 = vrot.lane.b32.xlu0 %v702, 32
        %v1038 = vpop.permute.xlu0 %1037
        %1039 = vrot.lane.b32.xlu0 %v856, 32
        %v1040 = vpop.permute.xlu0 %1039
        %1041 = vrot.lane.b32.xlu0 %v858, 32
        %v1042 = vpop.permute.xlu0 %1041
        %1043 = vrot.lane.b32.xlu0 %v1012, 32
        %v1044 = vpop.permute.xlu0 %1043
        %1045 = vrot.lane.b32.xlu0 %v1014, 32
        %v1046 = vpop.permute.xlu0 %1045
        %vm1063 = vcmask 31744
        %v1064 = vsel %vm1063, %v537, %v615
        %v1065 = vsel %vm1063, %v481, %v617
        %v1066 = vsel %vm1063, %v538, %v619
        %v1067 = vsel %vm1063, %v484, %v621
        %v1068 = vsel %vm1063, %v539, %v623
        %v1069 = vsel %vm1063, %v487, %v625
        %v1070 = vsel %vm1063, %v540, %v627
        %v1071 = vsel %vm1063, %v490, %v629
        %v1072 = vsel %vm1063, %v541, %v631
        %v1073 = vsel %vm1063, %v493, %v633
        %v1074 = vsel %vm1063, %v542, %v635
        %v1075 = vsel %vm1063, %v496, %v637
        %v1076 = vsel %vm1063, %v543, %v639
        %v1077 = vsel %vm1063, %v499, %v641
        %v1078 = vsel %vm1063, %v544, %v643
        %v1079 = vsel %vm1063, %v502, %v645
        %vm1080 = vcmask 64512
        %v1081 = vsel %vm1080, %v1064, %v704
        %v1082 = vsel %vm1080, %v1065, %v706
        %v1083 = vsel %vm1080, %v1066, %v708
        %v1084 = vsel %vm1080, %v1067, %v710
        %v1085 = vsel %vm1080, %v1068, %v712
        %v1086 = vsel %vm1080, %v1069, %v714
        %v1087 = vsel %vm1080, %v1070, %v716
        %v1088 = vsel %vm1080, %v1071, %v718
        %v1089 = vsel %vm1080, %v1072, %v720
        %v1090 = vsel %vm1080, %v1073, %v722
        %v1091 = vsel %vm1080, %v1074, %v724
        %v1092 = vsel %vm1080, %v1075, %v726
        %v1093 = vsel %vm1080, %v1076, %v728
        %v1094 = vsel %vm1080, %v1077, %v730
        %v1095 = vsel %vm1080, %v1078, %v732
        %v1096 = vsel %vm1080, %v1079, %v734
        %vm1097 = vcmask 97280
        %v1098 = vsel %vm1097, %v1081, %v753
        %v1099 = vsel %vm1097, %v1082, %v755
        %v1100 = vsel %vm1097, %v1083, %v757
        %v1101 = vsel %vm1097, %v1084, %v759
        %v1102 = vsel %vm1097, %v1085, %v761
        %v1103 = vsel %vm1097, %v1086, %v763
        %v1104 = vsel %vm1097, %v1087, %v765
        %v1105 = vsel %vm1097, %v1088, %v767
        %v1106 = vsel %vm1097, %v1089, %v769
        %v1107 = vsel %vm1097, %v1090, %v771
        %v1108 = vsel %vm1097, %v1091, %v773
        %v1109 = vsel %vm1097, %v1092, %v775
        %v1110 = vsel %vm1097, %v1093, %v777
        %v1111 = vsel %vm1097, %v1094, %v779
        %v1112 = vsel %vm1097, %v1095, %v781
        %v1113 = vsel %vm1097, %v1096, %v783
        %vm1114 = vcmask 130048
        %v1115 = vsel %vm1114, %v1098, %v807
        %v1116 = vsel %vm1114, %v1099, %v809
        %v1117 = vsel %vm1114, %v1100, %v811
        %v1118 = vsel %vm1114, %v1101, %v813
        %v1119 = vsel %vm1114, %v1102, %v815
        %v1120 = vsel %vm1114, %v1103, %v817
        %v1121 = vsel %vm1114, %v1104, %v819
        %v1122 = vsel %vm1114, %v1105, %v821
        %v1123 = vsel %vm1114, %v1106, %v823
        %v1124 = vsel %vm1114, %v1107, %v825
        %v1125 = vsel %vm1114, %v1108, %v827
        %v1126 = vsel %vm1114, %v1109, %v829
        %v1127 = vsel %vm1114, %v1110, %v831
        %v1128 = vsel %vm1114, %v1111, %v833
        %v1129 = vsel %vm1114, %v1112, %v835
        %v1130 = vsel %vm1114, %v1113, %v837
        %vm1131 = vcmask 162816
        %v1132 = vsel %vm1131, %v1115, %v860
        %v1133 = vsel %vm1131, %v1116, %v862
        %v1134 = vsel %vm1131, %v1117, %v864
        %v1135 = vsel %vm1131, %v1118, %v866
        %v1136 = vsel %vm1131, %v1119, %v868
        %v1137 = vsel %vm1131, %v1120, %v870
        %v1138 = vsel %vm1131, %v1121, %v872
        %v1139 = vsel %vm1131, %v1122, %v874
        %v1140 = vsel %vm1131, %v1123, %v876
        %v1141 = vsel %vm1131, %v1124, %v878
        %v1142 = vsel %vm1131, %v1125, %v880
        %v1143 = vsel %vm1131, %v1126, %v882
        %v1144 = vsel %vm1131, %v1127, %v884
        %v1145 = vsel %vm1131, %v1128, %v886
        %v1146 = vsel %vm1131, %v1129, %v888
        %v1147 = vsel %vm1131, %v1130, %v890
        %vm1148 = vcmask 195584
        %v1149 = vsel %vm1148, %v1132, %v909
        %v1150 = vsel %vm1148, %v1133, %v911
        %v1151 = vsel %vm1148, %v1134, %v913
        %v1152 = vsel %vm1148, %v1135, %v915
        %v1153 = vsel %vm1148, %v1136, %v917
        %v1154 = vsel %vm1148, %v1137, %v919
        %v1155 = vsel %vm1148, %v1138, %v921
        %v1156 = vsel %vm1148, %v1139, %v923
        %v1157 = vsel %vm1148, %v1140, %v925
        %v1158 = vsel %vm1148, %v1141, %v927
        %v1159 = vsel %vm1148, %v1142, %v929
        %v1160 = vsel %vm1148, %v1143, %v931
        %v1161 = vsel %vm1148, %v1144, %v933
        %v1162 = vsel %vm1148, %v1145, %v935
        %v1163 = vsel %vm1148, %v1146, %v937
        %v1164 = vsel %vm1148, %v1147, %v939
        %vm1165 = vcmask 228352
        %v1166 = vsel %vm1165, %v1149, %v963
        %v1167 = vsel %vm1165, %v1150, %v965
        %v1168 = vsel %vm1165, %v1151, %v967
        %v1169 = vsel %vm1165, %v1152, %v969
        %v1170 = vsel %vm1165, %v1153, %v971
        %v1171 = vsel %vm1165, %v1154, %v973
        %v1172 = vsel %vm1165, %v1155, %v975
        %v1173 = vsel %vm1165, %v1156, %v977
        %v1174 = vsel %vm1165, %v1157, %v979
        %v1175 = vsel %vm1165, %v1158, %v981
        %v1176 = vsel %vm1165, %v1159, %v983
        %v1177 = vsel %vm1165, %v1160, %v985
        %v1178 = vsel %vm1165, %v1161, %v987
        %v1179 = vsel %vm1165, %v1162, %v989
        %v1180 = vsel %vm1165, %v1163, %v991
        %v1181 = vsel %vm1165, %v1164, %v993
        %vm1182 = vcmask 261120
        %v1183 = vsel %vm1182, %v1166, %v1016
        %v1184 = vsel %vm1182, %v1167, %v1018
        %v1185 = vsel %vm1182, %v1168, %v1020
        %v1186 = vsel %vm1182, %v1169, %v1022
        %v1187 = vsel %vm1182, %v1170, %v1024
        %v1188 = vsel %vm1182, %v1171, %v1026
        %v1189 = vsel %vm1182, %v1172, %v1028
        %v1190 = vsel %vm1182, %v1173, %v1030
        %v1191 = vsel %vm1182, %v1174, %v1032
        %v1192 = vsel %vm1182, %v1175, %v1034
        %v1193 = vsel %vm1182, %v1176, %v1036
        %v1194 = vsel %vm1182, %v1177, %v1038
        %v1195 = vsel %vm1182, %v1178, %v1040
        %v1196 = vsel %vm1182, %v1179, %v1042
        %v1197 = vsel %vm1182, %v1180, %v1044
        %v1198 = vsel %vm1182, %v1181, %v1046
        %v1199 = vld [vmem:[%s3] sm:$0xff]
        %v1200 = vld [vmem:[%s3 + $0x8] sm:$0xff]
        %v1201 = vld [vmem:[%s3 + $0x10] sm:$0xff]
        %v1202 = vld [vmem:[%s3 + $0x18] sm:$0xff]
        %v1203 = vld [vmem:[%s3 + $0x20] sm:$0xf]
        %vm1204 = vcmask 293888
        %v1206 = vsel %vm1204, %v1183, 0
        %v1209 = vsel %vm1204, %v1184, 0
        %v1212 = vsel %vm1204, %v1185, 0
        %v1215 = vsel %vm1204, %v1186, 0
        %v1218 = vsel %vm1204, %v1187, 0
        %v1221 = vsel %vm1204, %v1188, 0
        %v1224 = vsel %vm1204, %v1189, 0
        %v1227 = vsel %vm1204, %v1190, 0
        %v1230 = vsel %vm1204, %v1191, 0
        %v1233 = vsel %vm1204, %v1192, 0
        %v1236 = vsel %vm1204, %v1193, 0
        %v1239 = vsel %vm1204, %v1194, 0
        %v1242 = vsel %vm1204, %v1195, 0
        %v1245 = vsel %vm1204, %v1196, 0
        %v1248 = vsel %vm1204, %v1197, 0
        %v1251 = vsel %vm1204, %v1198, 0
        %vm1253 = vcmask 1043456
        %v1255 = vsel %vm1253, %v1203, 0
        %1257 = vmatprep.subr.mxu0 0.0
        %1258 = vmatpush1.msra.mxu0 %v1199
        %1259 = vmatprep.subr.mxu0 0.0
        %1260 = vmatpush1.msra.mxu0 %v1200
        %1261 = vmatprep.subr.mxu0 0.0
        %1262 = vmatpush1.msra.mxu0 %v1201
        %1263 = vmatprep.subr.mxu0 0.0
        %1264 = vmatpush1.msra.mxu0 %v1202
        %1265 = vmatprep.subr.mxu0 0.0
        %1266 = vmatpush1.msra.mxu0 %v1255
        %1267 = vmatprep.subr.mxu0 0.0
        %1268 = vmatpush1.msra.mxu0 0.0
        %1269 = vmatprep.subr.mxu0 0.0
        %1270 = vmatpush1.msra.mxu0 0.0
        %1271 = vmatprep.subr.mxu0 0.0
        %1272 = vmatpush1.msra.mxu0 0.0
        %1273 = vmatprep.subr.mxu0 0.0
        %1274 = vmatpush1.msra.mxu0 0.0
        %1275 = vmatprep.subr.mxu0 0.0
        %1276 = vmatpush1.msra.mxu0 0.0
        %1277 = vmatprep.subr.mxu0 0.0
        %1278 = vmatpush1.msra.mxu0 0.0
        %1279 = vmatprep.subr.mxu0 0.0
        %1280 = vmatpush1.msra.mxu0 0.0
        %1281 = vmatprep.subr.mxu0 0.0
        %1282 = vmatpush1.msra.mxu0 0.0
        %1283 = vmatprep.subr.mxu0 0.0
        %1284 = vmatpush1.msra.mxu0 0.0
        %1285 = vmatprep.subr.mxu0 0.0
        %1286 = vmatpush1.msra.mxu0 0.0
        %1287 = vmatprep.subr.mxu0 0.0
        %1288 = vmatpush1.msra.mxu0 0.0
        %1289 = vmatprep.subr.mxu0 0.0
        %1290 = vmatpush1.msra.mxu0 0.0
        %1291 = vmatprep.subr.mxu0 0.0
        %1292 = vmatpush1.msra.mxu0 0.0
        %1293 = vmatprep.subr.mxu0 0.0
        %1294 = vmatpush1.msra.mxu0 0.0
        %1295 = vmatprep.subr.mxu0 0.0
        %1296 = vmatpush1.msra.mxu0 0.0
        %1297 = vmatprep.subr.mxu0 0.0
        %1298 = vmatpush1.msra.mxu0 0.0
        %1299 = vmatprep.subr.mxu0 0.0
        %1300 = vmatpush1.msra.mxu0 0.0
        %1301 = vmatprep.subr.mxu0 0.0
        %1302 = vmatpush1.msra.mxu0 0.0
        %1303 = vmatprep.subr.mxu0 0.0
        %1304 = vmatpush1.msra.mxu0 0.0
        %1305 = vmatprep.subr.mxu0 0.0
        %1306 = vmatpush1.msra.mxu0 0.0
        %1307 = vmatprep.subr.mxu0 0.0
        %1308 = vmatpush1.msra.mxu0 0.0
        %1309 = vmatprep.subr.mxu0 0.0
        %1310 = vmatpush1.msra.mxu0 0.0
        %1311 = vmatprep.subr.mxu0 0.0
        %1312 = vmatpush1.msra.mxu0 0.0
        %1313 = vmatprep.subr.mxu0 0.0
        %1314 = vmatpush1.msra.mxu0 0.0
        %1315 = vmatprep.subr.mxu0 0.0
        %1316 = vmatpush1.msra.mxu0 0.0
        %1317 = vmatprep.subr.mxu0 0.0
        %1318 = vmatpush1.msra.mxu0 0.0
        %1319 = vmatprep.subr.mxu0 0.0
        %1320 = vmatpush1.msra.mxu0 0.0
        %1321 = vmatprep.mubr.f32.mxu0 0.0
        %1322 = vmatmul.mubr.f32.gmra.mrb[0].mxu0 %v1206
        %v1323 = vpop.f32.mrb[0].mxu0
        %v1324 = vadd.f32 0.0, %v1323
        %v1325 = vpop.f32.mrb[0].mxu0
        %1326 = vmatprep.mubr.f32.mxu0 0.0
        %1327 = vmatmul.mubr.f32.gmra.mrb[0].mxu0 %v1209
        %v1328 = vpop.f32.mrb[0].mxu0
        %v1329 = vadd.f32 0.0, %v1328
        %v1330 = vpop.f32.mrb[0].mxu0
        %1331 = vmatprep.mubr.f32.mxu0 0.0
        %1332 = vmatmul.mubr.f32.gmra.mrb[0].mxu0 %v1212
        %v1333 = vpop.f32.mrb[0].mxu0
        %v1334 = vadd.f32 0.0, %v1333
        %v1335 = vpop.f32.mrb[0].mxu0
        %1336 = vmatprep.mubr.f32.mxu0 0.0
        %1337 = vmatmul.mubr.f32.gmra.mrb[0].mxu0 %v1215
        %v1338 = vpop.f32.mrb[0].mxu0
        %v1339 = vadd.f32 0.0, %v1338
        %v1340 = vpop.f32.mrb[0].mxu0
        %1341 = vmatprep.mubr.f32.mxu0 0.0
        %1342 = vmatmul.mubr.f32.gmra.mrb[0].mxu0 %v1218
        %v1343 = vpop.f32.mrb[0].mxu0
        %v1344 = vadd.f32 0.0, %v1343
        %v1345 = vpop.f32.mrb[0].mxu0
        %1346 = vmatprep.mubr.f32.mxu0 0.0
        %1347 = vmatmul.mubr.f32.gmra.mrb[0].mxu0 %v1221
        %v1348 = vpop.f32.mrb[0].mxu0
        %v1349 = vadd.f32 0.0, %v1348
        %v1350 = vpop.f32.mrb[0].mxu0
        %1351 = vmatprep.mubr.f32.mxu0 0.0
        %1352 = vmatmul.mubr.f32.gmra.mrb[0].mxu0 %v1224
        %v1353 = vpop.f32.mrb[0].mxu0
        %v1354 = vadd.f32 0.0, %v1353
        %v1355 = vpop.f32.mrb[0].mxu0
        %1356 = vmatprep.mubr.f32.mxu0 0.0
        %1357 = vmatmul.mubr.f32.gmra.mrb[0].mxu0 %v1227
        %v1358 = vpop.f32.mrb[0].mxu0
        %v1359 = vadd.f32 0.0, %v1358
        %v1360 = vpop.f32.mrb[0].mxu0
        %1361 = vmatprep.mubr.f32.mxu0 0.0
        %1362 = vmatmul.mubr.f32.gmra.mrb[0].mxu0 %v1230
        %v1363 = vpop.f32.mrb[0].mxu0
        %v1364 = vadd.f32 0.0, %v1363
        %v1365 = vpop.f32.mrb[0].mxu0
        %1366 = vmatprep.mubr.f32.mxu0 0.0
        %1367 = vmatmul.mubr.f32.gmra.mrb[0].mxu0 %v1233
        %v1368 = vpop.f32.mrb[0].mxu0
        %v1369 = vadd.f32 0.0, %v1368
        %v1370 = vpop.f32.mrb[0].mxu0
        %1371 = vmatprep.mubr.f32.mxu0 0.0
        %1372 = vmatmul.mubr.f32.gmra.mrb[0].mxu0 %v1236
        %v1373 = vpop.f32.mrb[0].mxu0
        %v1374 = vadd.f32 0.0, %v1373
        %v1375 = vpop.f32.mrb[0].mxu0
        %1376 = vmatprep.mubr.f32.mxu0 0.0
        %1377 = vmatmul.mubr.f32.gmra.mrb[0].mxu0 %v1239
        %v1378 = vpop.f32.mrb[0].mxu0
        %v1379 = vadd.f32 0.0, %v1378
        %v1380 = vpop.f32.mrb[0].mxu0
        %1381 = vmatprep.mubr.f32.mxu0 0.0
        %1382 = vmatmul.mubr.f32.gmra.mrb[0].mxu0 %v1242
        %v1383 = vpop.f32.mrb[0].mxu0
        %v1384 = vadd.f32 0.0, %v1383
        %v1385 = vpop.f32.mrb[0].mxu0
        %1386 = vmatprep.mubr.f32.mxu0 0.0
        %1387 = vmatmul.mubr.f32.gmra.mrb[0].mxu0 %v1245
        %v1388 = vpop.f32.mrb[0].mxu0
        %v1389 = vadd.f32 0.0, %v1388
        %v1390 = vpop.f32.mrb[0].mxu0
        %1391 = vmatprep.mubr.f32.mxu0 0.0
        %1392 = vmatmul.mubr.f32.gmra.mrb[0].mxu0 %v1248
        %v1393 = vpop.f32.mrb[0].mxu0
        %v1394 = vadd.f32 0.0, %v1393
        %v1395 = vpop.f32.mrb[0].mxu0
        %1396 = vmatprep.mubr.f32.mxu0 0.0
        %1397 = vmatmul.mubr.f32.gmra.mrb[0].mxu0 %v1251
        %v1398 = vpop.f32.mrb[0].mxu0
        %v1399 = vadd.f32 0.0, %v1398
        %v1400 = vpop.f32.mrb[0].mxu0
        %1401 = vdwg.mxu0
        %1402 = vst.msk [vmem:[%s404] sm:$0xff] %vm1080, %v1324
        %1403 = vst.msk [vmem:[%s404 + $0x8] sm:$0xff] %vm1080, %v1329
        %1404 = vst.msk [vmem:[%s404 + $0x10] sm:$0xff] %vm1080, %v1334
        %1405 = vst.msk [vmem:[%s404 + $0x18] sm:$0xff] %vm1080, %v1339
        %1406 = vst.msk [vmem:[%s404 + $0x20] sm:$0xff] %vm1080, %v1344
        %1407 = vst.msk [vmem:[%s404 + $0x28] sm:$0xff] %vm1080, %v1349
        %1408 = vst.msk [vmem:[%s404 + $0x30] sm:$0xff] %vm1080, %v1354
        %1409 = vst.msk [vmem:[%s404 + $0x38] sm:$0xff] %vm1080, %v1359
        %1410 = vst.msk [vmem:[%s404 + $0x40] sm:$0xff] %vm1080, %v1364
        %1411 = vst.msk [vmem:[%s404 + $0x48] sm:$0xff] %vm1080, %v1369
        %1412 = vst.msk [vmem:[%s404 + $0x50] sm:$0xff] %vm1080, %v1374
        %1413 = vst.msk [vmem:[%s404 + $0x58] sm:$0xff] %vm1080, %v1379
        %1414 = vst.msk [vmem:[%s404 + $0x60] sm:$0xff] %vm1080, %v1384
        %1415 = vst.msk [vmem:[%s404 + $0x68] sm:$0xff] %vm1080, %v1389
        %1416 = vst.msk [vmem:[%s404 + $0x70] sm:$0xff] %vm1080, %v1394
        %1417 = vst.msk [vmem:[%s404 + $0x78] sm:$0xff] %vm1080, %v1399
        %v1418 = vsel %vm1080, %v1324, 0.0
        %v1419 = vsel %vm1080, %v1329, 0.0
        %v1420 = vadd.f32 %v1418, %v1419
        %v1421 = vsel %vm1080, %v1334, 0.0
        %v1422 = vadd.f32 %v1420, %v1421
        %v1423 = vsel %vm1080, %v1339, 0.0
        %v1424 = vadd.f32 %v1422, %v1423
        %v1425 = vsel %vm1080, %v1344, 0.0
        %v1426 = vadd.f32 %v1424, %v1425
        %v1427 = vsel %vm1080, %v1349, 0.0
        %v1428 = vadd.f32 %v1426, %v1427
        %v1429 = vsel %vm1080, %v1354, 0.0
        %v1430 = vadd.f32 %v1428, %v1429
        %v1431 = vsel %vm1080, %v1359, 0.0
        %v1432 = vadd.f32 %v1430, %v1431
        %v1433 = vsel %vm1080, %v1364, 0.0
        %v1434 = vadd.f32 %v1432, %v1433
        %v1435 = vsel %vm1080, %v1369, 0.0
        %v1436 = vadd.f32 %v1434, %v1435
        %v1437 = vsel %vm1080, %v1374, 0.0
        %v1438 = vadd.f32 %v1436, %v1437
        %v1439 = vsel %vm1080, %v1379, 0.0
        %v1440 = vadd.f32 %v1438, %v1439
        %v1441 = vsel %vm1080, %v1384, 0.0
        %v1442 = vadd.f32 %v1440, %v1441
        %v1443 = vsel %vm1080, %v1389, 0.0
        %v1444 = vadd.f32 %v1442, %v1443
        %v1445 = vsel %vm1080, %v1394, 0.0
        %v1446 = vadd.f32 %v1444, %v1445
        %v1447 = vsel %vm1080, %v1399, 0.0
        %v1448 = vadd.f32 %v1446, %v1447
        %v1449 = vrot.slane %v1448, 4
        %v1450 = vadd.f32 %v1448, %v1449
        %v1451 = vrot.slane %v1450, 2
        %v1452 = vadd.f32 %v1450, %v1451
        %v1453 = vrot.slane %v1452, 1
        %v1454 = vadd.f32 %v1452, %v1453
        %v1455 = vmul.f32 %v1324, %v1324
        %v1456 = vmul.f32 %v1329, %v1329
        %v1457 = vmul.f32 %v1334, %v1334
        %v1458 = vmul.f32 %v1339, %v1339
        %v1459 = vmul.f32 %v1344, %v1344
        %v1460 = vmul.f32 %v1349, %v1349
        %v1461 = vmul.f32 %v1354, %v1354
        %v1462 = vmul.f32 %v1359, %v1359
        %v1463 = vmul.f32 %v1364, %v1364
        %v1464 = vmul.f32 %v1369, %v1369
        %v1465 = vmul.f32 %v1374, %v1374
        %v1466 = vmul.f32 %v1379, %v1379
        %v1467 = vmul.f32 %v1384, %v1384
        %v1468 = vmul.f32 %v1389, %v1389
        %v1469 = vmul.f32 %v1394, %v1394
        %v1470 = vmul.f32 %v1399, %v1399
        %v1471 = vsel %vm1080, %v1455, 0.0
        %v1472 = vsel %vm1080, %v1456, 0.0
        %v1473 = vadd.f32 %v1471, %v1472
        %v1474 = vsel %vm1080, %v1457, 0.0
        %v1475 = vadd.f32 %v1473, %v1474
        %v1476 = vsel %vm1080, %v1458, 0.0
        %v1477 = vadd.f32 %v1475, %v1476
        %v1478 = vsel %vm1080, %v1459, 0.0
        %v1479 = vadd.f32 %v1477, %v1478
        %v1480 = vsel %vm1080, %v1460, 0.0
        %v1481 = vadd.f32 %v1479, %v1480
        %v1482 = vsel %vm1080, %v1461, 0.0
        %v1483 = vadd.f32 %v1481, %v1482
        %v1484 = vsel %vm1080, %v1462, 0.0
        %v1485 = vadd.f32 %v1483, %v1484
        %v1486 = vsel %vm1080, %v1463, 0.0
        %v1487 = vadd.f32 %v1485, %v1486
        %v1488 = vsel %vm1080, %v1464, 0.0
        %v1489 = vadd.f32 %v1487, %v1488
        %v1490 = vsel %vm1080, %v1465, 0.0
        %v1491 = vadd.f32 %v1489, %v1490
        %v1492 = vsel %vm1080, %v1466, 0.0
        %v1493 = vadd.f32 %v1491, %v1492
        %v1494 = vsel %vm1080, %v1467, 0.0
        %v1495 = vadd.f32 %v1493, %v1494
        %v1496 = vsel %vm1080, %v1468, 0.0
        %v1497 = vadd.f32 %v1495, %v1496
        %v1498 = vsel %vm1080, %v1469, 0.0
        %v1499 = vadd.f32 %v1497, %v1498
        %v1500 = vsel %vm1080, %v1470, 0.0
        %v1501 = vadd.f32 %v1499, %v1500
        %v1502 = vrot.slane %v1501, 4
        %v1503 = vadd.f32 %v1501, %v1502
        %v1504 = vrot.slane %v1503, 2
        %v1505 = vadd.f32 %v1503, %v1504
        %v1506 = vrot.slane %v1505, 1
        %v1507 = vadd.f32 %v1505, %v1506
        %v1508 = vsel %vm478, %v1454, %v1507
        %vm1509 = vcmask 58368
        %1510 = vst.msk [vmem:[%s349] sm:$0x3] %vm1509, %v1508
        %s1511 = smul.u32 8, %s25
        %p1512 = scmp.lt.s32.totalorder %s24, 1
        %s1513 = scalar_select %p1512, %s24, 1
        %p1514 = scmp.lt.s32.totalorder %s1511, 15
        %s1515 = scalar_select %p1514, %s1511, 15
        %s1516 = smul.addr %s1515, 2
        %s1517 = smul.addr %s1513, 32
        %s1518 = sadd.s32 %s1516, %s1517
        %s1519 = smul.addr %s1518, 8
        %s1520 = scalar_lea.vmem %s4, %s1519
        %s1521 = sand.u32 %s191, 1
        %s1522 = scalar_lea.sflag [#allocation3], %s1521
        %s1523 = sand.u32 %s191, 1
        %s1524 = smul.addr %s1523, 2
        %s1525 = scalar_lea.vmem [#allocation2], %s1524
        // Predicated region
        $region37: #{tpu_custom_call.1} parent=35 // pred_check
          %p1526 = pneg %p173
        $region38: #{tpu_custom_call.1} parent=35 // pred_check_branch
          %1528 = sbr.rel (%p1526) target = $region40
        $region39: #{tpu_custom_call.1} parent=35 // pred_region
          %s1529 = smul.u32 8, %s25
        $region40: #{tpu_custom_call.1} parent=35 // pred_fallthru
          _
        // Predicated region
        $region41: #{tpu_custom_call.1} parent=35 // pred_check
          %p1530 = pneg %p201
        $region42: #{tpu_custom_call.1} parent=35 // pred_check_branch
          %1532 = sbr.rel (%p1530) target = $region44
        $region43: #{tpu_custom_call.1} parent=35 // pred_region
          %s1534 = ssub.s32 32, 32
          %1535 = vsyncadd %s1522, %s1534
          %s1536 = smul.addr %s24, 2
          %s1537 = sadd.s32 %s25, %s1536
          %s1538 = smul.addr %s1537, 32
          %s1539 = scalar_lea.hbm %s5, %s1538
          %s1541 = sshll.u32 %s1525, 4
          %s1542 = int_to_ptr.vmem [resolvable:$true] %s1541
          %1544 = dma.vmem_to_hbm [thread:$0]  %s1542, 32, %s1539, %s1522
        $region44: #{tpu_custom_call.1} parent=35 // pred_fallthru
          _
      $region36: #{tpu_custom_call.1} parent=5 // pred_fallthru
        _
      %p1545 = scmp.le.s32.totalorder 2, %s15
      // Predicated region
      $region45: #{tpu_custom_call.1} parent=5 // pred_check
        %p1546 = pneg %p1545
      $region46: #{tpu_custom_call.1} parent=5 // pred_check_branch
        %1548 = sbr.rel (%p1546) target = $region48
      $region47: #{tpu_custom_call.1} parent=5 // pred_region
        %s1549 = ssub.s32 %s15, 2
        // Predicated region
        $region49: #{tpu_custom_call.1} parent=47 // pred_check
          %p1550 = pneg %p179
        $region50: #{tpu_custom_call.1} parent=47 // pred_check_branch
          %1552 = sbr.rel (%p1550) target = $region52
        $region51: #{tpu_custom_call.1} parent=47 // pred_region
          %s1553 = smul.u32 8, %s27
          %p1554 = scmp.lt.s32.totalorder %s26, 1
          %s1555 = scalar_select %p1554, %s26, 1
          %p1556 = scmp.lt.s32.totalorder %s1553, 15
          %s1557 = scalar_select %p1556, %s1553, 15
          %s1558 = smul.addr %s1557, 2
          %s1559 = smul.addr %s1555, 32
          %s1560 = sadd.s32 %s1558, %s1559
          %s1561 = smul.addr %s1560, 8
          %s1562 = scalar_lea.vmem %s4, %s1561
        $region52: #{tpu_custom_call.1} parent=47 // pred_fallthru
          _
        // Predicated region
        $region53: #{tpu_custom_call.1} parent=47 // pred_check
          %p1563 = pneg %p207
        $region54: #{tpu_custom_call.1} parent=47 // pred_check_branch
          %1565 = sbr.rel (%p1563) target = $region56
        $region55: #{tpu_custom_call.1} parent=47 // pred_region
          %s1566 = sand.u32 %s192, 1
          %s1567 = scalar_lea.sflag [#allocation3], %s1566
          %s1568 = sand.u32 %s192, 1
          %s1569 = smul.addr %s1568, 2
          %s1570 = scalar_lea.vmem [#allocation2], %s1569
          %1571 = dma.done %s1567, 32
        $region56: #{tpu_custom_call.1} parent=47 // pred_fallthru
          _
      $region48: #{tpu_custom_call.1} parent=5 // pred_fallthru
        _
    $region6: #{tpu_custom_call.1} parent=1 // loop_footer
      %s19 = sadd.s32 1, %s15
    $region7: #{tpu_custom_call.1} parent=1 // loop_footer_branch
      %14 = sbr.rel target = $region3
    $region8: #{tpu_custom_call.1} parent=1 // loop_exit
      _
    %1572 = vsyncpa [#allocation3], 1
    %s1573 = scalar_lea.sflag [#allocation3], 1
    %1574 = vsyncpa %s1573, 1

</llo_original>
